<compile_context>
chip_gen: v5e
topology: v5e:2x2
jax: 0.10.0
libtpu: 0.0.40
codegen_flags: <defaults>
</compile_context>

<pallas_src>
import math

import jax
import jax.numpy as jnp
from jax.experimental import pallas as pl
from jax.experimental.pallas import tpu as pltpu


def _round_up(x, m):
    return (x + m - 1) // m * m


def _vmem_cap_bytes():
    try:
        info = pltpu.get_tpu_info()
        return int(getattr(info, "vmem_capacity_bytes", 0)) or (128 << 20)
    except Exception:
        return 128 << 20


def _vmem_limit_bytes(row_tile, hp, at_p, meg_dim, w_bytes, out_bytes, vmem_cap):
    f32 = 4
    # Streamed, double-buffered row blocks (idx / megnet lane-pad to 128 in VMEM).
    stream = 2 * row_tile * (128 * f32 + max(meg_dim, 128) * f32 + hp * out_bytes)
    # Constant weights + biases; counted twice so the limit also covers the
    # fallback path where they end up double-buffered.
    weights = 2 * ((at_p + meg_dim + 4 * hp) * hp * w_bytes + 6 * 8 * hp * f32)
    # Live in-kernel intermediates (emb/megnet/gate/fused/h/out in f32 plus the
    # bf16 casts and the (TR, 2*Hp) concat) ~ 10 f32 row tiles.
    live = 10 * row_tile * hp * f32
    need = stream + weights + live + (4 << 20)          # Mosaic scratch headroom
    cap = (56 << 20) if vmem_cap <= (64 << 20) else (100 << 20)
    return int(min(max(need, 16 << 20), cap))


def _make_kernel(h_real, hp):
    inv_h = 1.0 / float(h_real)
    need_mask = h_real != hp

    def kernel(idx_ref, meg_ref, table_ref, mw_ref, mb_ref, gw_ref, gb_ref,
               w1_ref, b1_ref, lng_ref, lnb_ref, w2_ref, b2_ref, o_ref):
        ids = idx_ref[...]                               # (TR, 1) int32
        tr = ids.shape[0]
        wdt = table_ref.dtype                            # matmul / MXU dtype

        # Fused embedding gather: one_hot(ids) @ table on the MXU (0/1 one-hot
        # keeps the select exact even at bf16); the (Ap, Hp) table stays
        # resident in VMEM so no (R, Hp) gather ever touches HBM.
        # TODO(synk): ids >= num_atom_types silently yield a zero embedding
        # (PyTorch nn.Embedding would raise).
        cols = jax.lax.broadcasted_iota(jnp.int32, (tr, table_ref.shape[0]), 1)
        onehot = (cols == ids).astype(wdt)
        emb = jnp.dot(onehot, table_ref[...], preferred_element_type=jnp.float32)

        # megnet = megnet_embed @ Wm + bm
        megnet = (jnp.dot(meg_ref[...].astype(wdt), mw_ref[...],
                          preferred_element_type=jnp.float32) + mb_ref[...])

        # gate = sigmoid(cat([emb, megnet]) @ Wg + bg); a single K=2*Hp matmul
        # fills the deep v6e/v7x MXU better than two K=Hp halves.
        combined = jnp.concatenate([emb.astype(wdt), megnet.astype(wdt)], axis=-1)
        gate = jax.nn.sigmoid(
            jnp.dot(combined, gw_ref[...], preferred_element_type=jnp.float32)
            + gb_ref[...])

        # gate*emb + (1-gate)*megnet, one fewer VPU mul/sub.
        fused = megnet + gate * (emb - megnet)

        # out_proj: Linear -> SiLU -> LayerNorm -> Linear -> Dropout(eval: identity)
        h = (jnp.dot(fused.astype(wdt), w1_ref[...],
                     preferred_element_type=jnp.float32) + b1_ref[...])
        h = h * jax.nn.sigmoid(h)                        # SiLU, f32

        # LayerNorm over the real H lanes only (padded lanes are exactly zero).
        mean = jnp.sum(h, axis=-1, keepdims=True) * inv_h
        d = h - mean
        if need_mask:
            lane = jax.lax.broadcasted_iota(jnp.int32, (tr, hp), 1)
            d = jnp.where(lane < h_real, d, 0.0)
        var = jnp.sum(d * d, axis=-1, keepdims=True) * inv_h
        h = d * jax.lax.rsqrt(var + 1e-5)
        h = h * lng_ref[...] + lnb_ref[...]

        out = (jnp.dot(h.astype(wdt), w2_ref[...],
                       preferred_element_type=jnp.float32) + b2_ref[...])
        # TODO(synk): training-mode dropout (stateful PRNG masking) not implemented.
        o_ref[...] = out.astype(o_ref.dtype)

    return kernel


def prepare_params(p, *, weight_dtype=jnp.bfloat16):
    """Pad H / num_atom_types to multiples of 128, stack the gate weight into a
    single (2*Hp, Hp) matrix, and store matmul weights in `weight_dtype`
    (bf16 MXU path by default).  Biases / LayerNorm params stay f32."""
    A, H = p["emb_table"].shape
    Hp = _round_up(H, 128)
    Ap = _round_up(A, 128)
    meg_dim = p["mw"].shape[0]

    def pad2(a, rows, cols, dtype):
        out = jnp.zeros((rows, cols), dtype)
        return out.at[: a.shape[0], : a.shape[1]].set(a.astype(dtype))

    gw = jnp.zeros((2 * Hp, Hp), weight_dtype)
    gw = gw.at[:H, :H].set(p["gw"][:H].astype(weight_dtype))        # emb half
    gw = gw.at[Hp:Hp + H, :H].set(p["gw"][H:].astype(weight_dtype))  # megnet half

    kp = {
        "table": pad2(p["emb_table"], Ap, Hp, weight_dtype),
        "mw": pad2(p["mw"], meg_dim, Hp, weight_dtype),
        "mb": pad2(p["mb"], 1, Hp, jnp.float32),
        "gw": gw,
        "gb": pad2(p["gb"], 1, Hp, jnp.float32),
        "w1": pad2(p["w1"], Hp, Hp, weight_dtype),
        "b1": pad2(p["b1"], 1, Hp, jnp.float32),
        "ln_g": pad2(p["ln_g"], 1, Hp, jnp.float32),
        "ln_b": pad2(p["ln_b"], 1, Hp, jnp.float32),
        "w2": pad2(p["w2"], Hp, Hp, weight_dtype),
        "b2": pad2(p["b2"], 1, Hp, jnp.float32),
    }
    return kp, H, Hp


def atom_encoder_forward(atomic_numbers, megnet_embed, kp, hidden_dim, *,
                         row_tile=None, out_dtype=jnp.float32):
    """atomic_numbers: int (...,); megnet_embed: float (..., 16) -> (..., hidden_dim)."""
    H = hidden_dim
    Hp = kp["w1"].shape[0]
    Ap = kp["table"].shape[0]
    meg_dim = megnet_embed.shape[-1]
    lead_shape = atomic_numbers.shape
    R = math.prod(lead_shape) if lead_shape else 1

    # Big row tiles keep the MXU fed and amortize the ~0.35us per-grid-step cost;
    # scale down as Hp grows so live intermediates stay inside the VMEM budget.
    if row_tile is None:
        row_tile = 2048 if Hp <= 256 else max(256, (2048 * 256) // Hp)
    row_tile = max(8, min(row_tile, _round_up(R, 8)))
    # Guarantee >= 2 grid steps when there is enough work so the "parallel"
    # axis can shard across v7x's two TensorCores and the pipeline stays busy.
    if R > 16 and _round_up(R, row_tile) // row_tile < 2:
        row_tile = max(8, _round_up((R + 1) // 2, 8))
    Rp = _round_up(R, row_tile)

    idx = atomic_numbers.reshape(R, 1).astype(jnp.int32)
    meg = megnet_embed.reshape(R, meg_dim)
    if Rp != R:                      # pad rows; index 0 is a valid (unused) row
        idx = jnp.pad(idx, ((0, Rp - R), (0, 0)))
        meg = jnp.pad(meg, ((0, Rp - R), (0, 0)))

    vmem_limit = _vmem_limit_bytes(
        row_tile, Hp, Ap, meg_dim,
        jnp.dtype(kp["w1"].dtype).itemsize, jnp.dtype(out_dtype).itemsize,
        _vmem_cap_bytes())

    kernel = _make_kernel(H, Hp)
    grid = (Rp // row_tile,)
    args = (idx, meg, kp["table"], kp["mw"], kp["mb"], kp["gw"], kp["gb"],
            kp["w1"], kp["b1"], kp["ln_g"], kp["ln_b"], kp["w2"], kp["b2"])

    def build(single_buffer_weights):
        def row_spec(cols):
            return pl.BlockSpec((row_tile, cols), lambda i: (i, 0))

        def const_spec(shape):
            nd = len(shape)
            kwargs = {}
            if single_buffer_weights:
                # Weights never change across the grid: fetch once, keep one
                # buffer resident instead of paying 2x VMEM for double buffers.
                kwargs["pipeline_mode"] = pl.Buffered(1)
            return pl.BlockSpec(shape, lambda i: (0,) * nd, **kwargs)

        return pl.pallas_call(
            kernel,
            out_shape=jax.ShapeDtypeStruct((Rp, Hp), out_dtype),
            grid_spec=pltpu.PrefetchScalarGridSpec(
                num_scalar_prefetch=0,
                grid=grid,
                in_specs=[row_spec(1), row_spec(meg_dim)]
                         + [const_spec(kp[k].shape) for k in
                            ("table", "mw", "mb", "gw", "gb", "w1", "b1",
                             "ln_g", "ln_b", "w2", "b2")],
                out_specs=row_spec(Hp),
            ),
            compiler_params=pltpu.CompilerParams(
                dimension_semantics=("parallel",),
                vmem_limit_bytes=vmem_limit,
            ),
        )

    try:
        out = build(True)(*args)
    except Exception:
        # TODO(synk): drop this fallback once pl.Buffered(1) single-buffering is
        # guaranteed available on the deployed jax version.
        out = build(False)(*args)

    out = out[:R, :H]
    return out.reshape(*lead_shape, H)


def init_params(key, num_atom_types, hidden_dim):
    H = hidden_dim
    ks = jax.random.split(key, 5)
    scale = 0.05
    return {
        "emb_table": scale * jax.random.normal(ks[0], (num_atom_types, H), jnp.float32),
        "mw": scale * jax.random.normal(ks[1], (16, H), jnp.float32),
        "mb": jnp.zeros((1, H), jnp.float32),
        "gw": scale * jax.random.normal(ks[2], (2 * H, H), jnp.float32),
        "gb": jnp.zeros((1, H), jnp.float32),
        "w1": scale * jax.random.normal(ks[3], (H, H), jnp.float32),
        "b1": 0.01 * jnp.ones((1, H), jnp.float32),
        "ln_g": jnp.ones((1, H), jnp.float32),
        "ln_b": jnp.zeros((1, H), jnp.float32),
        "w2": scale * jax.random.normal(ks[4], (H, H), jnp.float32),
        "b2": 0.01 * jnp.ones((1, H), jnp.float32),
    }


def reference_forward(atomic_numbers, megnet_embed, p, weight_dtype=jnp.float32):
    """Pure-JAX reference mirroring the PyTorch module (eval mode).  Matmul
    weights are rounded to `weight_dtype` so it tracks the kernel's storage."""
    def w(x):
        return x.astype(weight_dtype).astype(jnp.float32)

    emb = w(p["emb_table"])[atomic_numbers]
    megnet = megnet_embed @ w(p["mw"]) + p["mb"][0]
    combined = jnp.concatenate([emb, megnet], axis=-1)
    gate = jax.nn.sigmoid(combined @ w(p["gw"]) + p["gb"][0])
    fused = gate * emb + (1 - gate) * megnet
    h = fused @ w(p["w1"]) + p["b1"][0]
    h = h * jax.nn.sigmoid(h)
    mean = jnp.mean(h, -1, keepdims=True)
    var = jnp.mean((h - mean) ** 2, -1, keepdims=True)
    h = (h - mean) / jnp.sqrt(var + 1e-5) * p["ln_g"][0] + p["ln_b"][0]
    return h @ w(p["w2"]) + p["b2"][0]


if __name__ == "__main__":
    key = jax.random.PRNGKey(0)
    num_atom_types, hidden_dim = 10, 32
    B, N = 2, 13  # 26 atom rows -> exercises row padding, 2 grid steps, H->128 pad

    k1, k2, k3 = jax.random.split(key, 3)
    params = init_params(k1, num_atom_types, hidden_dim)
    atomic_numbers = jax.random.randint(k2, (B, N), 0, num_atom_types, jnp.int32)
    megnet_embed = jax.random.normal(k3, (B, N, 16), jnp.float32)

    # f32-weight path: matches the pure-f32 reference tightly.
    kp32, H, _ = prepare_params(params, weight_dtype=jnp.float32)
    out32 = jax.block_until_ready(
        atom_encoder_forward(atomic_numbers, megnet_embed, kp32, H))
    ref32 = reference_forward(atomic_numbers, megnet_embed, params, jnp.float32)
    assert out32.shape == (B, N, hidden_dim)
    assert jnp.allclose(out32, ref32, atol=1e-5, rtol=1e-5), "f32 path mismatch"

    # Default bf16 weight/activation MXU path (bf16 rounding tolerance).
    kp16, H, _ = prepare_params(params)  # weight_dtype=bf16
    out16 = jax.block_until_ready(
        atom_encoder_forward(atomic_numbers, megnet_embed, kp16, H))
    ref16 = reference_forward(atomic_numbers, megnet_embed, params, jnp.bfloat16)
    assert out16.shape == (B, N, hidden_dim)
    assert jnp.allclose(out16, ref16, atol=3e-2, rtol=3e-2), "bf16 path mismatch"

    print("KERNEL_OK")
</pallas_src>

<mosaic_0001>
module attributes {stable_mosaic.version = 11 : i64} {
  func.func @kernel(%arg0: i32, %arg1: memref<16x1xi32, #tpu.memory_space<vmem>>, %arg2: memref<16x16xf32, #tpu.memory_space<vmem>>, %arg3: memref<128x128xf32, #tpu.memory_space<vmem>>, %arg4: memref<16x128xf32, #tpu.memory_space<vmem>>, %arg5: memref<1x128xf32, #tpu.memory_space<vmem>>, %arg6: memref<256x128xf32, #tpu.memory_space<vmem>>, %arg7: memref<1x128xf32, #tpu.memory_space<vmem>>, %arg8: memref<128x128xf32, #tpu.memory_space<vmem>>, %arg9: memref<1x128xf32, #tpu.memory_space<vmem>>, %arg10: memref<1x128xf32, #tpu.memory_space<vmem>>, %arg11: memref<1x128xf32, #tpu.memory_space<vmem>>, %arg12: memref<128x128xf32, #tpu.memory_space<vmem>>, %arg13: memref<1x128xf32, #tpu.memory_space<vmem>>, %arg14: memref<16x128xf32, #tpu.memory_space<vmem>>) attributes {dimension_semantics = [#tpu.dimension_semantics<parallel>], iteration_bounds = array<i64: 2>, scalar_prefetch = 0 : i64, scratch_operands = 0 : i64, tpu.core_type = #tpu.core_type<tc>, window_params = [{transform_indices = @transform_0, window_bounds = array<i64: 16, 1>}, {transform_indices = @transform_1, window_bounds = array<i64: 16, 16>}, {pipeline_mode = #tpu.pipeline_mode<synchronous>, transform_indices = @transform_2, window_bounds = array<i64: 128, 128>}, {pipeline_mode = #tpu.pipeline_mode<synchronous>, transform_indices = @transform_3, window_bounds = array<i64: 16, 128>}, {pipeline_mode = #tpu.pipeline_mode<synchronous>, transform_indices = @transform_4, window_bounds = array<i64: 1, 128>}, {pipeline_mode = #tpu.pipeline_mode<synchronous>, transform_indices = @transform_5, window_bounds = array<i64: 256, 128>}, {pipeline_mode = #tpu.pipeline_mode<synchronous>, transform_indices = @transform_6, window_bounds = array<i64: 1, 128>}, {pipeline_mode = #tpu.pipeline_mode<synchronous>, transform_indices = @transform_7, window_bounds = array<i64: 128, 128>}, {pipeline_mode = #tpu.pipeline_mode<synchronous>, transform_indices = @transform_8, window_bounds = array<i64: 1, 128>}, {pipeline_mode = #tpu.pipeline_mode<synchronous>, transform_indices = @transform_9, window_bounds = array<i64: 1, 128>}, {pipeline_mode = #tpu.pipeline_mode<synchronous>, transform_indices = @transform_10, window_bounds = array<i64: 1, 128>}, {pipeline_mode = #tpu.pipeline_mode<synchronous>, transform_indices = @transform_11, window_bounds = array<i64: 128, 128>}, {pipeline_mode = #tpu.pipeline_mode<synchronous>, transform_indices = @transform_12, window_bounds = array<i64: 1, 128>}, {transform_indices = @transform_13, window_bounds = array<i64: 16, 128>}]} {
    %c0 = arith.constant 0 : index
    %c0_0 = arith.constant 0 : index
    %0 = vector.load %arg1[%c0, %c0_0] : memref<16x1xi32, #tpu.memory_space<vmem>>, vector<16x1xi32>
    %1 = tpu.iota {dimensions = array<i32: 1>} : vector<16x128xi32>
    %2 = vector.broadcast %0 : vector<16x1xi32> to vector<16x128xi32>
    %3 = arith.cmpi eq, %1, %2 : vector<16x128xi32>
    %4 = arith.extui %3 : vector<16x128xi1> to vector<16x128xi32>
    %5 = arith.sitofp %4 : vector<16x128xi32> to vector<16x128xf32>
    %c0_1 = arith.constant 0 : index
    %c0_2 = arith.constant 0 : index
    %6 = vector.load %arg3[%c0_1, %c0_2] : memref<128x128xf32, #tpu.memory_space<vmem>>, vector<128x128xf32>
    %cst = arith.constant dense<0.000000e+00> : vector<16x128xf32>
    %7 = tpu.matmul %5, %6, %cst {dimension_numbers = #tpu.dot_dimension_numbers<[1], [0], [0], [1], [0, 0, 1, 1], [], []>} : vector<16x128xf32>, vector<128x128xf32>, vector<16x128xf32> -> vector<16x128xf32>
    %c0_3 = arith.constant 0 : index
    %c0_4 = arith.constant 0 : index
    %8 = vector.load %arg2[%c0_3, %c0_4] : memref<16x16xf32, #tpu.memory_space<vmem>>, vector<16x16xf32>
    %c0_5 = arith.constant 0 : index
    %c0_6 = arith.constant 0 : index
    %9 = vector.load %arg4[%c0_5, %c0_6] : memref<16x128xf32, #tpu.memory_space<vmem>>, vector<16x128xf32>
    %cst_7 = arith.constant dense<0.000000e+00> : vector<16x128xf32>
    %10 = tpu.matmul %8, %9, %cst_7 {dimension_numbers = #tpu.dot_dimension_numbers<[1], [0], [0], [1], [0, 0, 1, 1], [], []>} : vector<16x16xf32>, vector<16x128xf32>, vector<16x128xf32> -> vector<16x128xf32>
    %c0_8 = arith.constant 0 : index
    %c0_9 = arith.constant 0 : index
    %11 = vector.load %arg5[%c0_8, %c0_9] : memref<1x128xf32, #tpu.memory_space<vmem>>, vector<1x128xf32>
    %12 = vector.broadcast %11 : vector<1x128xf32> to vector<16x128xf32>
    %13 = arith.addf %10, %12 : vector<16x128xf32>
    %14 = tpu.concatenate %7, %13 in 1 : vector<16x128xf32>, vector<16x128xf32> -> vector<16x256xf32>
    %c0_10 = arith.constant 0 : index
    %c0_11 = arith.constant 0 : index
    %15 = vector.load %arg6[%c0_10, %c0_11] : memref<256x128xf32, #tpu.memory_space<vmem>>, vector<256x128xf32>
    %cst_12 = arith.constant dense<0.000000e+00> : vector<16x128xf32>
    %16 = tpu.matmul %14, %15, %cst_12 {dimension_numbers = #tpu.dot_dimension_numbers<[1], [0], [0], [1], [0, 0, 1, 1], [], []>} : vector<16x256xf32>, vector<256x128xf32>, vector<16x128xf32> -> vector<16x128xf32>
    %c0_13 = arith.constant 0 : index
    %c0_14 = arith.constant 0 : index
    %17 = vector.load %arg7[%c0_13, %c0_14] : memref<1x128xf32, #tpu.memory_space<vmem>>, vector<1x128xf32>
    %18 = vector.broadcast %17 : vector<1x128xf32> to vector<16x128xf32>
    %19 = arith.addf %16, %18 : vector<16x128xf32>
    %20 = arith.negf %19 : vector<16x128xf32>
    %21 = math.exp %20 : vector<16x128xf32>
    %cst_15 = arith.constant 1.000000e+00 : f32
    %22 = vector.broadcast %cst_15 : f32 to vector<16x128xf32>
    %23 = arith.addf %22, %21 : vector<16x128xf32>
    %24 = arith.divf %22, %23 : vector<16x128xf32>
    %25 = arith.subf %7, %13 : vector<16x128xf32>
    %26 = arith.mulf %24, %25 : vector<16x128xf32>
    %27 = arith.addf %13, %26 : vector<16x128xf32>
    %c0_16 = arith.constant 0 : index
    %c0_17 = arith.constant 0 : index
    %28 = vector.load %arg8[%c0_16, %c0_17] : memref<128x128xf32, #tpu.memory_space<vmem>>, vector<128x128xf32>
    %cst_18 = arith.constant dense<0.000000e+00> : vector<16x128xf32>
    %29 = tpu.matmul %27, %28, %cst_18 {dimension_numbers = #tpu.dot_dimension_numbers<[1], [0], [0], [1], [0, 0, 1, 1], [], []>} : vector<16x128xf32>, vector<128x128xf32>, vector<16x128xf32> -> vector<16x128xf32>
    %c0_19 = arith.constant 0 : index
    %c0_20 = arith.constant 0 : index
    %30 = vector.load %arg9[%c0_19, %c0_20] : memref<1x128xf32, #tpu.memory_space<vmem>>, vector<1x128xf32>
    %31 = vector.broadcast %30 : vector<1x128xf32> to vector<16x128xf32>
    %32 = arith.addf %29, %31 : vector<16x128xf32>
    %33 = arith.negf %32 : vector<16x128xf32>
    %34 = math.exp %33 : vector<16x128xf32>
    %cst_21 = arith.constant 1.000000e+00 : f32
    %35 = vector.broadcast %cst_21 : f32 to vector<16x128xf32>
    %36 = arith.addf %35, %34 : vector<16x128xf32>
    %37 = arith.divf %35, %36 : vector<16x128xf32>
    %38 = arith.mulf %32, %37 : vector<16x128xf32>
    %cst_22 = arith.constant dense<0.000000e+00> : vector<16xf32>
    %39 = vector.multi_reduction <add>, %38, %cst_22 [1] : vector<16x128xf32> to vector<16xf32>
    %40 = vector.shape_cast %39 : vector<16xf32> to vector<16x1xf32>
    %cst_23 = arith.constant 3.125000e-02 : f32
    %41 = vector.broadcast %cst_23 : f32 to vector<16x1xf32>
    %42 = arith.mulf %40, %41 : vector<16x1xf32>
    %43 = vector.broadcast %42 : vector<16x1xf32> to vector<16x128xf32>
    %44 = arith.subf %38, %43 : vector<16x128xf32>
    %45 = tpu.iota {dimensions = array<i32: 1>} : vector<16x128xi32>
    %c32_i32 = arith.constant 32 : i32
    %46 = vector.broadcast %c32_i32 : i32 to vector<16x128xi32>
    %47 = arith.cmpi slt, %45, %46 : vector<16x128xi32>
    %cst_24 = arith.constant 0.000000e+00 : f32
    %48 = vector.broadcast %cst_24 : f32 to vector<16x128xf32>
    %49 = arith.select %47, %44, %48 : vector<16x128xi1>, vector<16x128xf32>
    %50 = arith.mulf %49, %49 : vector<16x128xf32>
    %cst_25 = arith.constant dense<0.000000e+00> : vector<16xf32>
    %51 = vector.multi_reduction <add>, %50, %cst_25 [1] : vector<16x128xf32> to vector<16xf32>
    %52 = vector.shape_cast %51 : vector<16xf32> to vector<16x1xf32>
    %cst_26 = arith.constant 3.125000e-02 : f32
    %53 = vector.broadcast %cst_26 : f32 to vector<16x1xf32>
    %54 = arith.mulf %52, %53 : vector<16x1xf32>
    %cst_27 = arith.constant 9.99999974E-6 : f32
    %55 = vector.broadcast %cst_27 : f32 to vector<16x1xf32>
    %56 = arith.addf %54, %55 : vector<16x1xf32>
    %57 = math.rsqrt %56 : vector<16x1xf32>
    %58 = vector.broadcast %57 : vector<16x1xf32> to vector<16x128xf32>
    %59 = arith.mulf %49, %58 : vector<16x128xf32>
    %c0_28 = arith.constant 0 : index
    %c0_29 = arith.constant 0 : index
    %60 = vector.load %arg10[%c0_28, %c0_29] : memref<1x128xf32, #tpu.memory_space<vmem>>, vector<1x128xf32>
    %61 = vector.broadcast %60 : vector<1x128xf32> to vector<16x128xf32>
    %62 = arith.mulf %59, %61 : vector<16x128xf32>
    %c0_30 = arith.constant 0 : index
    %c0_31 = arith.constant 0 : index
    %63 = vector.load %arg11[%c0_30, %c0_31] : memref<1x128xf32, #tpu.memory_space<vmem>>, vector<1x128xf32>
    %64 = vector.broadcast %63 : vector<1x128xf32> to vector<16x128xf32>
    %65 = arith.addf %62, %64 : vector<16x128xf32>
    %c0_32 = arith.constant 0 : index
    %c0_33 = arith.constant 0 : index
    %66 = vector.load %arg12[%c0_32, %c0_33] : memref<128x128xf32, #tpu.memory_space<vmem>>, vector<128x128xf32>
    %cst_34 = arith.constant dense<0.000000e+00> : vector<16x128xf32>
    %67 = tpu.matmul %65, %66, %cst_34 {dimension_numbers = #tpu.dot_dimension_numbers<[1], [0], [0], [1], [0, 0, 1, 1], [], []>} : vector<16x128xf32>, vector<128x128xf32>, vector<16x128xf32> -> vector<16x128xf32>
    %c0_35 = arith.constant 0 : index
    %c0_36 = arith.constant 0 : index
    %68 = vector.load %arg13[%c0_35, %c0_36] : memref<1x128xf32, #tpu.memory_space<vmem>>, vector<1x128xf32>
    %69 = vector.broadcast %68 : vector<1x128xf32> to vector<16x128xf32>
    %70 = arith.addf %67, %69 : vector<16x128xf32>
    %c0_37 = arith.constant 0 : index
    %c0_38 = arith.constant 0 : index
    %71 = vector.load %arg14[%c0_37, %c0_38] : memref<16x128xf32, #tpu.memory_space<vmem>>, vector<16x128xf32>
    tpu.vector_store %arg14[%c0_37, %c0_38], %70 {strides = array<i32>} : memref<16x128xf32, #tpu.memory_space<vmem>>, vector<16x128xf32>,
    return
  }
  func.func @transform_0(%arg0: i32) -> (i32, i32) {
    %c0_i32 = arith.constant 0 : i32
    %c0_i32_0 = arith.constant 0 : i32
    return %arg0, %c0_i32 : i32, i32
  }
  func.func @transform_1(%arg0: i32) -> (i32, i32) {
    %c0_i32 = arith.constant 0 : i32
    %c0_i32_0 = arith.constant 0 : i32
    return %arg0, %c0_i32 : i32, i32
  }
  func.func @transform_2(%arg0: i32) -> (i32, i32) {
    %c0_i32 = arith.constant 0 : i32
    %c0_i32_0 = arith.constant 0 : i32
    %c0_i32_1 = arith.constant 0 : i32
    return %c0_i32, %c0_i32_0 : i32, i32
  }
  func.func @transform_3(%arg0: i32) -> (i32, i32) {
    %c0_i32 = arith.constant 0 : i32
    %c0_i32_0 = arith.constant 0 : i32
    %c0_i32_1 = arith.constant 0 : i32
    return %c0_i32, %c0_i32_0 : i32, i32
  }
  func.func @transform_4(%arg0: i32) -> (i32, i32) {
    %c0_i32 = arith.constant 0 : i32
    %c0_i32_0 = arith.constant 0 : i32
    %c0_i32_1 = arith.constant 0 : i32
    return %c0_i32, %c0_i32_0 : i32, i32
  }
  func.func @transform_5(%arg0: i32) -> (i32, i32) {
    %c0_i32 = arith.constant 0 : i32
    %c0_i32_0 = arith.constant 0 : i32
    %c0_i32_1 = arith.constant 0 : i32
    return %c0_i32, %c0_i32_0 : i32, i32
  }
  func.func @transform_6(%arg0: i32) -> (i32, i32) {
    %c0_i32 = arith.constant 0 : i32
    %c0_i32_0 = arith.constant 0 : i32
    %c0_i32_1 = arith.constant 0 : i32
    return %c0_i32, %c0_i32_0 : i32, i32
  }
  func.func @transform_7(%arg0: i32) -> (i32, i32) {
    %c0_i32 = arith.constant 0 : i32
    %c0_i32_0 = arith.constant 0 : i32
    %c0_i32_1 = arith.constant 0 : i32
    return %c0_i32, %c0_i32_0 : i32, i32
  }
  func.func @transform_8(%arg0: i32) -> (i32, i32) {
    %c0_i32 = arith.constant 0 : i32
    %c0_i32_0 = arith.constant 0 : i32
    %c0_i32_1 = arith.constant 0 : i32
    return %c0_i32, %c0_i32_0 : i32, i32
  }
  func.func @transform_9(%arg0: i32) -> (i32, i32) {
    %c0_i32 = arith.constant 0 : i32
    %c0_i32_0 = arith.constant 0 : i32
    %c0_i32_1 = arith.constant 0 : i32
    return %c0_i32, %c0_i32_0 : i32, i32
  }
  func.func @transform_10(%arg0: i32) -> (i32, i32) {
    %c0_i32 = arith.constant 0 : i32
    %c0_i32_0 = arith.constant 0 : i32
    %c0_i32_1 = arith.constant 0 : i32
    return %c0_i32, %c0_i32_0 : i32, i32
  }
  func.func @transform_11(%arg0: i32) -> (i32, i32) {
    %c0_i32 = arith.constant 0 : i32
    %c0_i32_0 = arith.constant 0 : i32
    %c0_i32_1 = arith.constant 0 : i32
    return %c0_i32, %c0_i32_0 : i32, i32
  }
  func.func @transform_12(%arg0: i32) -> (i32, i32) {
    %c0_i32 = arith.constant 0 : i32
    %c0_i32_0 = arith.constant 0 : i32
    %c0_i32_1 = arith.constant 0 : i32
    return %c0_i32, %c0_i32_0 : i32, i32
  }
  func.func @transform_13(%arg0: i32) -> (i32, i32) {
    %c0_i32 = arith.constant 0 : i32
    %c0_i32_0 = arith.constant 0 : i32
    return %arg0, %c0_i32 : i32, i32
  }
}

module attributes {stable_mosaic.version = 11 : i64} {
  func.func @kernel(%arg0: i32, %arg1: memref<16x1xi32, #tpu.memory_space<vmem>>, %arg2: memref<16x16xf32, #tpu.memory_space<vmem>>, %arg3: memref<128x128xf32, #tpu.memory_space<vmem>>, %arg4: memref<16x128xf32, #tpu.memory_space<vmem>>, %arg5: memref<1x128xf32, #tpu.memory_space<vmem>>, %arg6: memref<256x128xf32, #tpu.memory_space<vmem>>, %arg7: memref<1x128xf32, #tpu.memory_space<vmem>>, %arg8: memref<128x128xf32, #tpu.memory_space<vmem>>, %arg9: memref<1x128xf32, #tpu.memory_space<vmem>>, %arg10: memref<1x128xf32, #tpu.memory_space<vmem>>, %arg11: memref<1x128xf32, #tpu.memory_space<vmem>>, %arg12: memref<128x128xf32, #tpu.memory_space<vmem>>, %arg13: memref<1x128xf32, #tpu.memory_space<vmem>>, %arg14: memref<16x128xf32, #tpu.memory_space<vmem>>) attributes {dimension_semantics = [#tpu.dimension_semantics<parallel>], iteration_bounds = array<i64: 2>, scalar_prefetch = 0 : i64, scratch_operands = 0 : i64, tpu.core_type = #tpu.core_type<tc>, window_params = [{transform_indices = @transform_0, window_bounds = array<i64: 16, 1>}, {transform_indices = @transform_1, window_bounds = array<i64: 16, 16>}, {pipeline_mode = #tpu.pipeline_mode<synchronous>, transform_indices = @transform_2, window_bounds = array<i64: 128, 128>}, {pipeline_mode = #tpu.pipeline_mode<synchronous>, transform_indices = @transform_3, window_bounds = array<i64: 16, 128>}, {pipeline_mode = #tpu.pipeline_mode<synchronous>, transform_indices = @transform_4, window_bounds = array<i64: 1, 128>}, {pipeline_mode = #tpu.pipeline_mode<synchronous>, transform_indices = @transform_5, window_bounds = array<i64: 256, 128>}, {pipeline_mode = #tpu.pipeline_mode<synchronous>, transform_indices = @transform_6, window_bounds = array<i64: 1, 128>}, {pipeline_mode = #tpu.pipeline_mode<synchronous>, transform_indices = @transform_7, window_bounds = array<i64: 128, 128>}, {pipeline_mode = #tpu.pipeline_mode<synchronous>, transform_indices = @transform_8, window_bounds = array<i64: 1, 128>}, {pipeline_mode = #tpu.pipeline_mode<synchronous>, transform_indices = @transform_9, window_bounds = array<i64: 1, 128>}, {pipeline_mode = #tpu.pipeline_mode<synchronous>, transform_indices = @transform_10, window_bounds = array<i64: 1, 128>}, {pipeline_mode = #tpu.pipeline_mode<synchronous>, transform_indices = @transform_11, window_bounds = array<i64: 128, 128>}, {pipeline_mode = #tpu.pipeline_mode<synchronous>, transform_indices = @transform_12, window_bounds = array<i64: 1, 128>}, {transform_indices = @transform_13, window_bounds = array<i64: 16, 128>}]} {
    %c0 = arith.constant 0 : index
    %c0_0 = arith.constant 0 : index
    %0 = vector.load %arg1[%c0, %c0_0] : memref<16x1xi32, #tpu.memory_space<vmem>>, vector<16x1xi32>
    %1 = tpu.iota {dimensions = array<i32: 1>} : vector<16x128xi32>
    %2 = vector.broadcast %0 : vector<16x1xi32> to vector<16x128xi32>
    %3 = arith.cmpi eq, %1, %2 : vector<16x128xi32>
    %4 = arith.extui %3 : vector<16x128xi1> to vector<16x128xi32>
    %5 = arith.sitofp %4 : vector<16x128xi32> to vector<16x128xf32>
    %c0_1 = arith.constant 0 : index
    %c0_2 = arith.constant 0 : index
    %6 = vector.load %arg3[%c0_1, %c0_2] : memref<128x128xf32, #tpu.memory_space<vmem>>, vector<128x128xf32>
    %cst = arith.constant dense<0.000000e+00> : vector<16x128xf32>
    %7 = tpu.matmul %5, %6, %cst {dimension_numbers = #tpu.dot_dimension_numbers<[1], [0], [0], [1], [0, 0, 1, 1], [], []>} : vector<16x128xf32>, vector<128x128xf32>, vector<16x128xf32> -> vector<16x128xf32>
    %c0_3 = arith.constant 0 : index
    %c0_4 = arith.constant 0 : index
    %8 = vector.load %arg2[%c0_3, %c0_4] : memref<16x16xf32, #tpu.memory_space<vmem>>, vector<16x16xf32>
    %c0_5 = arith.constant 0 : index
    %c0_6 = arith.constant 0 : index
    %9 = vector.load %arg4[%c0_5, %c0_6] : memref<16x128xf32, #tpu.memory_space<vmem>>, vector<16x128xf32>
    %cst_7 = arith.constant dense<0.000000e+00> : vector<16x128xf32>
    %10 = tpu.matmul %8, %9, %cst_7 {dimension_numbers = #tpu.dot_dimension_numbers<[1], [0], [0], [1], [0, 0, 1, 1], [], []>} : vector<16x16xf32>, vector<16x128xf32>, vector<16x128xf32> -> vector<16x128xf32>
    %c0_8 = arith.constant 0 : index
    %c0_9 = arith.constant 0 : index
    %11 = vector.load %arg5[%c0_8, %c0_9] : memref<1x128xf32, #tpu.memory_space<vmem>>, vector<1x128xf32>
    %12 = vector.broadcast %11 : vector<1x128xf32> to vector<16x128xf32>
    %13 = arith.addf %10, %12 : vector<16x128xf32>
    %14 = tpu.concatenate %7, %13 in 1 : vector<16x128xf32>, vector<16x128xf32> -> vector<16x256xf32>
    %c0_10 = arith.constant 0 : index
    %c0_11 = arith.constant 0 : index
    %15 = vector.load %arg6[%c0_10, %c0_11] : memref<256x128xf32, #tpu.memory_space<vmem>>, vector<256x128xf32>
    %cst_12 = arith.constant dense<0.000000e+00> : vector<16x128xf32>
    %16 = tpu.matmul %14, %15, %cst_12 {dimension_numbers = #tpu.dot_dimension_numbers<[1], [0], [0], [1], [0, 0, 1, 1], [], []>} : vector<16x256xf32>, vector<256x128xf32>, vector<16x128xf32> -> vector<16x128xf32>
    %c0_13 = arith.constant 0 : index
    %c0_14 = arith.constant 0 : index
    %17 = vector.load %arg7[%c0_13, %c0_14] : memref<1x128xf32, #tpu.memory_space<vmem>>, vector<1x128xf32>
    %18 = vector.broadcast %17 : vector<1x128xf32> to vector<16x128xf32>
    %19 = arith.addf %16, %18 : vector<16x128xf32>
    %20 = arith.negf %19 : vector<16x128xf32>
    %21 = math.exp %20 : vector<16x128xf32>
    %cst_15 = arith.constant 1.000000e+00 : f32
    %22 = vector.broadcast %cst_15 : f32 to vector<16x128xf32>
    %23 = arith.addf %22, %21 : vector<16x128xf32>
    %24 = arith.divf %22, %23 : vector<16x128xf32>
    %25 = arith.subf %7, %13 : vector<16x128xf32>
    %26 = arith.mulf %24, %25 : vector<16x128xf32>
    %27 = arith.addf %13, %26 : vector<16x128xf32>
    %c0_16 = arith.constant 0 : index
    %c0_17 = arith.constant 0 : index
    %28 = vector.load %arg8[%c0_16, %c0_17] : memref<128x128xf32, #tpu.memory_space<vmem>>, vector<128x128xf32>
    %cst_18 = arith.constant dense<0.000000e+00> : vector<16x128xf32>
    %29 = tpu.matmul %27, %28, %cst_18 {dimension_numbers = #tpu.dot_dimension_numbers<[1], [0], [0], [1], [0, 0, 1, 1], [], []>} : vector<16x128xf32>, vector<128x128xf32>, vector<16x128xf32> -> vector<16x128xf32>
    %c0_19 = arith.constant 0 : index
    %c0_20 = arith.constant 0 : index
    %30 = vector.load %arg9[%c0_19, %c0_20] : memref<1x128xf32, #tpu.memory_space<vmem>>, vector<1x128xf32>
    %31 = vector.broadcast %30 : vector<1x128xf32> to vector<16x128xf32>
    %32 = arith.addf %29, %31 : vector<16x128xf32>
    %33 = arith.negf %32 : vector<16x128xf32>
    %34 = math.exp %33 : vector<16x128xf32>
    %cst_21 = arith.constant 1.000000e+00 : f32
    %35 = vector.broadcast %cst_21 : f32 to vector<16x128xf32>
    %36 = arith.addf %35, %34 : vector<16x128xf32>
    %37 = arith.divf %35, %36 : vector<16x128xf32>
    %38 = arith.mulf %32, %37 : vector<16x128xf32>
    %cst_22 = arith.constant dense<0.000000e+00> : vector<16xf32>
    %39 = vector.multi_reduction <add>, %38, %cst_22 [1] : vector<16x128xf32> to vector<16xf32>
    %40 = vector.shape_cast %39 : vector<16xf32> to vector<16x1xf32>
    %cst_23 = arith.constant 3.125000e-02 : f32
    %41 = vector.broadcast %cst_23 : f32 to vector<16x1xf32>
    %42 = arith.mulf %40, %41 : vector<16x1xf32>
    %43 = vector.broadcast %42 : vector<16x1xf32> to vector<16x128xf32>
    %44 = arith.subf %38, %43 : vector<16x128xf32>
    %45 = tpu.iota {dimensions = array<i32: 1>} : vector<16x128xi32>
    %c32_i32 = arith.constant 32 : i32
    %46 = vector.broadcast %c32_i32 : i32 to vector<16x128xi32>
    %47 = arith.cmpi slt, %45, %46 : vector<16x128xi32>
    %cst_24 = arith.constant 0.000000e+00 : f32
    %48 = vector.broadcast %cst_24 : f32 to vector<16x128xf32>
    %49 = arith.select %47, %44, %48 : vector<16x128xi1>, vector<16x128xf32>
    %50 = arith.mulf %49, %49 : vector<16x128xf32>
    %cst_25 = arith.constant dense<0.000000e+00> : vector<16xf32>
    %51 = vector.multi_reduction <add>, %50, %cst_25 [1] : vector<16x128xf32> to vector<16xf32>
    %52 = vector.shape_cast %51 : vector<16xf32> to vector<16x1xf32>
    %cst_26 = arith.constant 3.125000e-02 : f32
    %53 = vector.broadcast %cst_26 : f32 to vector<16x1xf32>
    %54 = arith.mulf %52, %53 : vector<16x1xf32>
    %cst_27 = arith.constant 9.99999974E-6 : f32
    %55 = vector.broadcast %cst_27 : f32 to vector<16x1xf32>
    %56 = arith.addf %54, %55 : vector<16x1xf32>
    %57 = math.rsqrt %56 : vector<16x1xf32>
    %58 = vector.broadcast %57 : vector<16x1xf32> to vector<16x128xf32>
    %59 = arith.mulf %49, %58 : vector<16x128xf32>
    %c0_28 = arith.constant 0 : index
    %c0_29 = arith.constant 0 : index
    %60 = vector.load %arg10[%c0_28, %c0_29] : memref<1x128xf32, #tpu.memory_space<vmem>>, vector<1x128xf32>
    %61 = vector.broadcast %60 : vector<1x128xf32> to vector<16x128xf32>
    %62 = arith.mulf %59, %61 : vector<16x128xf32>
    %c0_30 = arith.constant 0 : index
    %c0_31 = arith.constant 0 : index
    %63 = vector.load %arg11[%c0_30, %c0_31] : memref<1x128xf32, #tpu.memory_space<vmem>>, vector<1x128xf32>
    %64 = vector.broadcast %63 : vector<1x128xf32> to vector<16x128xf32>
    %65 = arith.addf %62, %64 : vector<16x128xf32>
    %c0_32 = arith.constant 0 : index
    %c0_33 = arith.constant 0 : index
    %66 = vector.load %arg12[%c0_32, %c0_33] : memref<128x128xf32, #tpu.memory_space<vmem>>, vector<128x128xf32>
    %cst_34 = arith.constant dense<0.000000e+00> : vector<16x128xf32>
    %67 = tpu.matmul %65, %66, %cst_34 {dimension_numbers = #tpu.dot_dimension_numbers<[1], [0], [0], [1], [0, 0, 1, 1], [], []>} : vector<16x128xf32>, vector<128x128xf32>, vector<16x128xf32> -> vector<16x128xf32>
    %c0_35 = arith.constant 0 : index
    %c0_36 = arith.constant 0 : index
    %68 = vector.load %arg13[%c0_35, %c0_36] : memref<1x128xf32, #tpu.memory_space<vmem>>, vector<1x128xf32>
    %69 = vector.broadcast %68 : vector<1x128xf32> to vector<16x128xf32>
    %70 = arith.addf %67, %69 : vector<16x128xf32>
    %c0_37 = arith.constant 0 : index
    %c0_38 = arith.constant 0 : index
    %71 = vector.load %arg14[%c0_37, %c0_38] : memref<16x128xf32, #tpu.memory_space<vmem>>, vector<16x128xf32>
    tpu.vector_store %arg14[%c0_37, %c0_38], %70 {strides = array<i32>} : memref<16x128xf32, #tpu.memory_space<vmem>>, vector<16x128xf32>,
    return
  }
  func.func @transform_0(%arg0: i32) -> (i32, i32) {
    %c0_i32 = arith.constant 0 : i32
    %c0_i32_0 = arith.constant 0 : i32
    return %arg0, %c0_i32 : i32, i32
  }
  func.func @transform_1(%arg0: i32) -> (i32, i32) {
    %c0_i32 = arith.constant 0 : i32
    %c0_i32_0 = arith.constant 0 : i32
    return %arg0, %c0_i32 : i32, i32
  }
  func.func @transform_2(%arg0: i32) -> (i32, i32) {
    %c0_i32 = arith.constant 0 : i32
    %c0_i32_0 = arith.constant 0 : i32
    %c0_i32_1 = arith.constant 0 : i32
    return %c0_i32, %c0_i32_0 : i32, i32
  }
  func.func @transform_3(%arg0: i32) -> (i32, i32) {
    %c0_i32 = arith.constant 0 : i32
    %c0_i32_0 = arith.constant 0 : i32
    %c0_i32_1 = arith.constant 0 : i32
    return %c0_i32, %c0_i32_0 : i32, i32
  }
  func.func @transform_4(%arg0: i32) -> (i32, i32) {
    %c0_i32 = arith.constant 0 : i32
    %c0_i32_0 = arith.constant 0 : i32
    %c0_i32_1 = arith.constant 0 : i32
    return %c0_i32, %c0_i32_0 : i32, i32
  }
  func.func @transform_5(%arg0: i32) -> (i32, i32) {
    %c0_i32 = arith.constant 0 : i32
    %c0_i32_0 = arith.constant 0 : i32
    %c0_i32_1 = arith.constant 0 : i32
    return %c0_i32, %c0_i32_0 : i32, i32
  }
  func.func @transform_6(%arg0: i32) -> (i32, i32) {
    %c0_i32 = arith.constant 0 : i32
    %c0_i32_0 = arith.constant 0 : i32
    %c0_i32_1 = arith.constant 0 : i32
    return %c0_i32, %c0_i32_0 : i32, i32
  }
  func.func @transform_7(%arg0: i32) -> (i32, i32) {
    %c0_i32 = arith.constant 0 : i32
    %c0_i32_0 = arith.constant 0 : i32
    %c0_i32_1 = arith.constant 0 : i32
    return %c0_i32, %c0_i32_0 : i32, i32
  }
  func.func @transform_8(%arg0: i32) -> (i32, i32) {
    %c0_i32 = arith.constant 0 : i32
    %c0_i32_0 = arith.constant 0 : i32
    %c0_i32_1 = arith.constant 0 : i32
    return %c0_i32, %c0_i32_0 : i32, i32
  }
  func.func @transform_9(%arg0: i32) -> (i32, i32) {
    %c0_i32 = arith.constant 0 : i32
    %c0_i32_0 = arith.constant 0 : i32
    %c0_i32_1 = arith.constant 0 : i32
    return %c0_i32, %c0_i32_0 : i32, i32
  }
  func.func @transform_10(%arg0: i32) -> (i32, i32) {
    %c0_i32 = arith.constant 0 : i32
    %c0_i32_0 = arith.constant 0 : i32
    %c0_i32_1 = arith.constant 0 : i32
    return %c0_i32, %c0_i32_0 : i32, i32
  }
  func.func @transform_11(%arg0: i32) -> (i32, i32) {
    %c0_i32 = arith.constant 0 : i32
    %c0_i32_0 = arith.constant 0 : i32
    %c0_i32_1 = arith.constant 0 : i32
    return %c0_i32, %c0_i32_0 : i32, i32
  }
  func.func @transform_12(%arg0: i32) -> (i32, i32) {
    %c0_i32 = arith.constant 0 : i32
    %c0_i32_0 = arith.constant 0 : i32
    %c0_i32_1 = arith.constant 0 : i32
    return %c0_i32, %c0_i32_0 : i32, i32
  }
  func.func @transform_13(%arg0: i32) -> (i32, i32) {
    %c0_i32 = arith.constant 0 : i32
    %c0_i32_0 = arith.constant 0 : i32
    return %arg0, %c0_i32 : i32, i32
  }
}

</mosaic_0001>

<llo_original>
// kernel: tpu_custom_call.1
$region0: #{tpu_custom_call.1}
  #allocation0 [shape = 'u32[]', space=smem, size = 0x4, offset = 0x4, fixed_abs, tag = 'smem constant byte address 0x4 - core index']
  #allocation1 [shape = 'u32[72,128]{1,0:T(1,128)}', space=vmem, size = 0x9000, scoped, tag = 'internal scratch']
  %s0 = inlined_call_operand.vmem [shape: s32[32,1], index: 0, kind: input, shape index: {}]
  %s1 = inlined_call_operand.vmem [shape: f32[32,16], index: 1, kind: input, shape index: {}]
  %s2 = inlined_call_operand.hbm [shape: f32[128,128], index: 2, kind: input, shape index: {}]
  %s3 = inlined_call_operand.vmem [shape: f32[16,128], index: 3, kind: input, shape index: {}]
  %s4 = inlined_call_operand.vmem [shape: f32[1,128], index: 4, kind: input, shape index: {}]
  %s5 = inlined_call_operand.hbm [shape: f32[256,128], index: 5, kind: input, shape index: {}]
  %s6 = inlined_call_operand.vmem [shape: f32[1,128], index: 6, kind: input, shape index: {}]
  %s7 = inlined_call_operand.hbm [shape: f32[128,128], index: 7, kind: input, shape index: {}]
  %s8 = inlined_call_operand.vmem [shape: f32[1,128], index: 8, kind: input, shape index: {}]
  %s9 = inlined_call_operand.vmem [shape: f32[1,128], index: 9, kind: input, shape index: {}]
  %s10 = inlined_call_operand.vmem [shape: f32[1,128], index: 10, kind: input, shape index: {}]
  %s11 = inlined_call_operand.hbm [shape: f32[128,128], index: 11, kind: input, shape index: {}]
  %s12 = inlined_call_operand.vmem [shape: f32[1,128], index: 12, kind: input, shape index: {}]
  %s13 = inlined_call_operand.hbm [shape: f32[32,128], index: 13, kind: output, shape index: {}]
  %s14 = sld [smem:[#allocation0]]
  $region101: #{tpu_custom_call.1} parent=0
    _
  %s16 = ssub.s32 1, %s14
  %s17 = scalar_select 0, %s16, %s14
  $region1: #{tpu_custom_call.1} parent=0
    #allocation2 [shape = 'u8[65536]{0}', space=vmem, size = 0x10000, scoped, tag = 'input window, operand 2, single buffered']
    #allocation3 [shape = 's32[2]{0}', space=sflag, size = 0x8, scoped, tag = 'scoped memory for tpu_custom_call.1']
    #allocation4 [shape = 's32[2]{0}', space=sflag, size = 0x8, scoped, tag = 'scoped memory for tpu_custom_call.1']
    #allocation5 [shape = 'u8[131072]{0}', space=vmem, size = 0x20000, scoped, tag = 'input window, operand 5, single buffered']
    #allocation6 [shape = 's32[1]{0}', space=sflag, size = 0x4, scoped, tag = 'scoped memory for tpu_custom_call.1']
    #allocation7 [shape = 'u8[65536]{0}', space=vmem, size = 0x10000, scoped, tag = 'input window, operand 7, single buffered']
    #allocation8 [shape = 'u8[65536]{0}', space=vmem, size = 0x10000, scoped, tag = 'input window, operand 11, single buffered']
    #allocation9 [shape = 's32[1]{0}', space=sflag, size = 0x4, scoped, tag = 'scoped memory for tpu_custom_call.1']
    #allocation10 [shape = 'u8[16384]{0}', space=vmem, size = 0x4000, scoped, tag = 'output window, operand 0']
    %18 = vsyncpa [#allocation3], 0
    %19 = vsyncpa [#allocation6], 0
    %20 = vsyncpa [#allocation9], 0
    %21 = vsyncpa [#allocation4], 0
    %s22 = scalar_lea.sflag [#allocation4], 1
    %23 = vsyncpa %s22, 0
    loop: start=0, step=1, limit=4
    $region2: #{tpu_custom_call.1} parent=1 // loop_pre_header
      _
    $region3: #{tpu_custom_call.1} parent=1 // loop_header
      %s25 = sphi 0, %s29
      %p26 = scmp.ge.s32.totalorder %s25, 4
      %s35 = sphi 0, %s37
      %s38 = sphi 0, %s35
      %s39 = sphi 0, %s38
      %s55 = sphi 0, %s39
      %s61 = sphi 0, %s63
      %s64 = sphi 0, %s61
      %s65 = sphi 0, %s64
      %s81 = sphi 0, %s65
      %s85 = sphi 0, %s85
      %s87 = sphi 0, %s85
      %s88 = sphi 0, %s87
      %s102 = sphi 0, %s88
      %s106 = sphi 0, %s106
      %s108 = sphi 0, %s106
      %s109 = sphi 0, %s108
      %s123 = sphi 0, %s109
      %s127 = sphi 0, %s127
      %s129 = sphi 0, %s127
      %s130 = sphi 0, %s129
      %s144 = sphi 0, %s130
      %s148 = sphi 0, %s148
      %s150 = sphi 0, %s148
      %s151 = sphi 0, %s150
      %s165 = sphi 0, %s151
      %s169 = sphi 0, %s169
      %s171 = sphi 0, %s169
      %s172 = sphi 0, %s171
      %s186 = sphi 0, %s172
      %s190 = sphi 0, %s190
      %s192 = sphi 0, %s190
      %s193 = sphi 0, %s192
      %s207 = sphi 0, %s193
      %s211 = sphi 0, %s211
      %s213 = sphi 0, %s211
      %s214 = sphi 0, %s213
      %s228 = sphi 0, %s214
      %s232 = sphi 0, %s232
      %s234 = sphi 0, %s232
      %s235 = sphi 0, %s234
      %s249 = sphi 0, %s235
      %s253 = sphi 0, %s253
      %s255 = sphi 0, %s253
      %s256 = sphi 0, %s255
      %s270 = sphi 0, %s256
      %s274 = sphi 0, %s274
      %s276 = sphi 0, %s274
      %s277 = sphi 0, %s276
      %s291 = sphi 0, %s277
      %s295 = sphi 0, %s295
      %s297 = sphi 0, %s295
      %s298 = sphi 0, %s297
      %s312 = sphi 0, %s298
      %s318 = sphi 0, %s320
      %s321 = sphi 0, %s318
      %s322 = sphi 0, %s321
      %s338 = sphi 0, %s322
    $region4: #{tpu_custom_call.1} parent=1 // loop_header_branch
      %28 = sbr.rel (%p26) target = $region8
    $region5: #{tpu_custom_call.1} parent=1 // loop_body
      %s30 = ssub.s32 %s25, 1
      %s31 = ssub.s32 %s25, 2
      %s32 = sadd.s32 %s25, 1
      %s33 = ssub.s32 %s25, %s32
      %p34 = scmp.eq.s32.totalorder %s33, 0
      %s36 = sadd.s32 %s35, 1
      %s37 = scalar_select %p34, %s35, %s36
      %p40 = pneg %p34
      %p41 = scmp.eq.s32.totalorder %s25, 1
      %p42 = por %p40, %p41
      %p43 = scmp.ne.s32.totalorder %s35, %s38
      %p44 = scmp.eq.s32.totalorder %s25, 0
      %p45 = por %p43, %p44
      %p46 = scmp.ne.s32.totalorder %s35, %s38
      %p47 = scmp.eq.s32.totalorder %s30, 1
      %p48 = por %p46, %p47
      %p49 = scmp.ne.s32.totalorder %s38, %s39
      %p50 = scmp.eq.s32.totalorder %s30, 0
      %p51 = por %p49, %p50
      %p52 = scmp.ne.s32.totalorder %s38, %s39
      %p53 = scmp.eq.s32.totalorder %s31, 1
      %p54 = por %p52, %p53
      %p56 = scmp.ne.s32.totalorder %s39, %s55
      %p57 = scmp.eq.s32.totalorder %s31, 0
      %p58 = por %p56, %p57
      %s59 = ssub.s32 %s25, %s32
      %p60 = scmp.eq.s32.totalorder %s59, 0
      %s62 = sadd.s32 %s61, 1
      %s63 = scalar_select %p60, %s61, %s62
      %p66 = pneg %p60
      %p67 = scmp.eq.s32.totalorder %s25, 1
      %p68 = por %p66, %p67
      %p69 = scmp.ne.s32.totalorder %s61, %s64
      %p70 = scmp.eq.s32.totalorder %s25, 0
      %p71 = por %p69, %p70
      %p72 = scmp.ne.s32.totalorder %s61, %s64
      %p73 = scmp.eq.s32.totalorder %s30, 1
      %p74 = por %p72, %p73
      %p75 = scmp.ne.s32.totalorder %s64, %s65
      %p76 = scmp.eq.s32.totalorder %s30, 0
      %p77 = por %p75, %p76
      %p78 = scmp.ne.s32.totalorder %s64, %s65
      %p79 = scmp.eq.s32.totalorder %s31, 1
      %p80 = por %p78, %p79
      %p82 = scmp.ne.s32.totalorder %s65, %s81
      %p83 = scmp.eq.s32.totalorder %s31, 0
      %p84 = por %p82, %p83
      %s86 = sadd.s32 %s85, 1
      %p89 = scmp.eq.s32.totalorder %s25, 1
      %p90 = scmp.ne.s32.totalorder %s85, %s87
      %p91 = scmp.eq.s32.totalorder %s25, 0
      %p92 = por %p90, %p91
      %p93 = scmp.ne.s32.totalorder %s85, %s87
      %p94 = scmp.eq.s32.totalorder %s30, 1
      %p95 = por %p93, %p94
      %p96 = scmp.ne.s32.totalorder %s87, %s88
      %p97 = scmp.eq.s32.totalorder %s30, 0
      %p98 = por %p96, %p97
      %p99 = scmp.ne.s32.totalorder %s87, %s88
      %p100 = scmp.eq.s32.totalorder %s31, 1
      %p101 = por %p99, %p100
      %p103 = scmp.ne.s32.totalorder %s88, %s102
      %p104 = scmp.eq.s32.totalorder %s31, 0
      %p105 = por %p103, %p104
      %s107 = sadd.s32 %s106, 1
      %p110 = scmp.eq.s32.totalorder %s25, 1
      %p111 = scmp.ne.s32.totalorder %s106, %s108
      %p112 = scmp.eq.s32.totalorder %s25, 0
      %p113 = por %p111, %p112
      %p114 = scmp.ne.s32.totalorder %s106, %s108
      %p115 = scmp.eq.s32.totalorder %s30, 1
      %p116 = por %p114, %p115
      %p117 = scmp.ne.s32.totalorder %s108, %s109
      %p118 = scmp.eq.s32.totalorder %s30, 0
      %p119 = por %p117, %p118
      %p120 = scmp.ne.s32.totalorder %s108, %s109
      %p121 = scmp.eq.s32.totalorder %s31, 1
      %p122 = por %p120, %p121
      %p124 = scmp.ne.s32.totalorder %s109, %s123
      %p125 = scmp.eq.s32.totalorder %s31, 0
      %p126 = por %p124, %p125
      %s128 = sadd.s32 %s127, 1
      %p131 = scmp.eq.s32.totalorder %s25, 1
      %p132 = scmp.ne.s32.totalorder %s127, %s129
      %p133 = scmp.eq.s32.totalorder %s25, 0
      %p134 = por %p132, %p133
      %p135 = scmp.ne.s32.totalorder %s127, %s129
      %p136 = scmp.eq.s32.totalorder %s30, 1
      %p137 = por %p135, %p136
      %p138 = scmp.ne.s32.totalorder %s129, %s130
      %p139 = scmp.eq.s32.totalorder %s30, 0
      %p140 = por %p138, %p139
      %p141 = scmp.ne.s32.totalorder %s129, %s130
      %p142 = scmp.eq.s32.totalorder %s31, 1
      %p143 = por %p141, %p142
      %p145 = scmp.ne.s32.totalorder %s130, %s144
      %p146 = scmp.eq.s32.totalorder %s31, 0
      %p147 = por %p145, %p146
      %s149 = sadd.s32 %s148, 1
      %p152 = scmp.eq.s32.totalorder %s25, 1
      %p153 = scmp.ne.s32.totalorder %s148, %s150
      %p154 = scmp.eq.s32.totalorder %s25, 0
      %p155 = por %p153, %p154
      %p156 = scmp.ne.s32.totalorder %s148, %s150
      %p157 = scmp.eq.s32.totalorder %s30, 1
      %p158 = por %p156, %p157
      %p159 = scmp.ne.s32.totalorder %s150, %s151
      %p160 = scmp.eq.s32.totalorder %s30, 0
      %p161 = por %p159, %p160
      %p162 = scmp.ne.s32.totalorder %s150, %s151
      %p163 = scmp.eq.s32.totalorder %s31, 1
      %p164 = por %p162, %p163
      %p166 = scmp.ne.s32.totalorder %s151, %s165
      %p167 = scmp.eq.s32.totalorder %s31, 0
      %p168 = por %p166, %p167
      %s170 = sadd.s32 %s169, 1
      %p173 = scmp.eq.s32.totalorder %s25, 1
      %p174 = scmp.ne.s32.totalorder %s169, %s171
      %p175 = scmp.eq.s32.totalorder %s25, 0
      %p176 = por %p174, %p175
      %p177 = scmp.ne.s32.totalorder %s169, %s171
      %p178 = scmp.eq.s32.totalorder %s30, 1
      %p179 = por %p177, %p178
      %p180 = scmp.ne.s32.totalorder %s171, %s172
      %p181 = scmp.eq.s32.totalorder %s30, 0
      %p182 = por %p180, %p181
      %p183 = scmp.ne.s32.totalorder %s171, %s172
      %p184 = scmp.eq.s32.totalorder %s31, 1
      %p185 = por %p183, %p184
      %p187 = scmp.ne.s32.totalorder %s172, %s186
      %p188 = scmp.eq.s32.totalorder %s31, 0
      %p189 = por %p187, %p188
      %s191 = sadd.s32 %s190, 1
      %p194 = scmp.eq.s32.totalorder %s25, 1
      %p195 = scmp.ne.s32.totalorder %s190, %s192
      %p196 = scmp.eq.s32.totalorder %s25, 0
      %p197 = por %p195, %p196
      %p198 = scmp.ne.s32.totalorder %s190, %s192
      %p199 = scmp.eq.s32.totalorder %s30, 1
      %p200 = por %p198, %p199
      %p201 = scmp.ne.s32.totalorder %s192, %s193
      %p202 = scmp.eq.s32.totalorder %s30, 0
      %p203 = por %p201, %p202
      %p204 = scmp.ne.s32.totalorder %s192, %s193
      %p205 = scmp.eq.s32.totalorder %s31, 1
      %p206 = por %p204, %p205
      %p208 = scmp.ne.s32.totalorder %s193, %s207
      %p209 = scmp.eq.s32.totalorder %s31, 0
      %p210 = por %p208, %p209
      %s212 = sadd.s32 %s211, 1
      %p215 = scmp.eq.s32.totalorder %s25, 1
      %p216 = scmp.ne.s32.totalorder %s211, %s213
      %p217 = scmp.eq.s32.totalorder %s25, 0
      %p218 = por %p216, %p217
      %p219 = scmp.ne.s32.totalorder %s211, %s213
      %p220 = scmp.eq.s32.totalorder %s30, 1
      %p221 = por %p219, %p220
      %p222 = scmp.ne.s32.totalorder %s213, %s214
      %p223 = scmp.eq.s32.totalorder %s30, 0
      %p224 = por %p222, %p223
      %p225 = scmp.ne.s32.totalorder %s213, %s214
      %p226 = scmp.eq.s32.totalorder %s31, 1
      %p227 = por %p225, %p226
      %p229 = scmp.ne.s32.totalorder %s214, %s228
      %p230 = scmp.eq.s32.totalorder %s31, 0
      %p231 = por %p229, %p230
      %s233 = sadd.s32 %s232, 1
      %p236 = scmp.eq.s32.totalorder %s25, 1
      %p237 = scmp.ne.s32.totalorder %s232, %s234
      %p238 = scmp.eq.s32.totalorder %s25, 0
      %p239 = por %p237, %p238
      %p240 = scmp.ne.s32.totalorder %s232, %s234
      %p241 = scmp.eq.s32.totalorder %s30, 1
      %p242 = por %p240, %p241
      %p243 = scmp.ne.s32.totalorder %s234, %s235
      %p244 = scmp.eq.s32.totalorder %s30, 0
      %p245 = por %p243, %p244
      %p246 = scmp.ne.s32.totalorder %s234, %s235
      %p247 = scmp.eq.s32.totalorder %s31, 1
      %p248 = por %p246, %p247
      %p250 = scmp.ne.s32.totalorder %s235, %s249
      %p251 = scmp.eq.s32.totalorder %s31, 0
      %p252 = por %p250, %p251
      %s254 = sadd.s32 %s253, 1
      %p257 = scmp.eq.s32.totalorder %s25, 1
      %p258 = scmp.ne.s32.totalorder %s253, %s255
      %p259 = scmp.eq.s32.totalorder %s25, 0
      %p260 = por %p258, %p259
      %p261 = scmp.ne.s32.totalorder %s253, %s255
      %p262 = scmp.eq.s32.totalorder %s30, 1
      %p263 = por %p261, %p262
      %p264 = scmp.ne.s32.totalorder %s255, %s256
      %p265 = scmp.eq.s32.totalorder %s30, 0
      %p266 = por %p264, %p265
      %p267 = scmp.ne.s32.totalorder %s255, %s256
      %p268 = scmp.eq.s32.totalorder %s31, 1
      %p269 = por %p267, %p268
      %p271 = scmp.ne.s32.totalorder %s256, %s270
      %p272 = scmp.eq.s32.totalorder %s31, 0
      %p273 = por %p271, %p272
      %s275 = sadd.s32 %s274, 1
      %p278 = scmp.eq.s32.totalorder %s25, 1
      %p279 = scmp.ne.s32.totalorder %s274, %s276
      %p280 = scmp.eq.s32.totalorder %s25, 0
      %p281 = por %p279, %p280
      %p282 = scmp.ne.s32.totalorder %s274, %s276
      %p283 = scmp.eq.s32.totalorder %s30, 1
      %p284 = por %p282, %p283
      %p285 = scmp.ne.s32.totalorder %s276, %s277
      %p286 = scmp.eq.s32.totalorder %s30, 0
      %p287 = por %p285, %p286
      %p288 = scmp.ne.s32.totalorder %s276, %s277
      %p289 = scmp.eq.s32.totalorder %s31, 1
      %p290 = por %p288, %p289
      %p292 = scmp.ne.s32.totalorder %s277, %s291
      %p293 = scmp.eq.s32.totalorder %s31, 0
      %p294 = por %p292, %p293
      %s296 = sadd.s32 %s295, 1
      %p299 = scmp.eq.s32.totalorder %s25, 1
      %p300 = scmp.ne.s32.totalorder %s295, %s297
      %p301 = scmp.eq.s32.totalorder %s25, 0
      %p302 = por %p300, %p301
      %p303 = scmp.ne.s32.totalorder %s295, %s297
      %p304 = scmp.eq.s32.totalorder %s30, 1
      %p305 = por %p303, %p304
      %p306 = scmp.ne.s32.totalorder %s297, %s298
      %p307 = scmp.eq.s32.totalorder %s30, 0
      %p308 = por %p306, %p307
      %p309 = scmp.ne.s32.totalorder %s297, %s298
      %p310 = scmp.eq.s32.totalorder %s31, 1
      %p311 = por %p309, %p310
      %p313 = scmp.ne.s32.totalorder %s298, %s312
      %p314 = scmp.eq.s32.totalorder %s31, 0
      %p315 = por %p313, %p314
      %s316 = ssub.s32 %s25, %s32
      %p317 = scmp.eq.s32.totalorder %s316, 0
      %s319 = sadd.s32 %s318, 1
      %s320 = scalar_select %p317, %s318, %s319
      %p323 = pneg %p317
      %p324 = scmp.eq.s32.totalorder %s25, 1
      %p325 = por %p323, %p324
      %p326 = scmp.ne.s32.totalorder %s318, %s321
      %p327 = scmp.eq.s32.totalorder %s25, 0
      %p328 = por %p326, %p327
      %p329 = scmp.ne.s32.totalorder %s318, %s321
      %p330 = scmp.eq.s32.totalorder %s30, 1
      %p331 = por %p329, %p330
      %p332 = scmp.ne.s32.totalorder %s321, %s322
      %p333 = scmp.eq.s32.totalorder %s30, 0
      %p334 = por %p332, %p333
      %p335 = scmp.ne.s32.totalorder %s321, %s322
      %p336 = scmp.eq.s32.totalorder %s31, 1
      %p337 = por %p335, %p336
      %p339 = scmp.ne.s32.totalorder %s322, %s338
      %p340 = scmp.eq.s32.totalorder %s31, 0
      %p341 = por %p339, %p340
      %p342 = scmp.le.s32.totalorder 1, %s25
      %p343 = scmp.lt.s32.totalorder %s25, 3
      %p344 = pnand %p342, %p343
      %p345 = pneg %p344
      // Predicated region
      $region9: #{tpu_custom_call.1} parent=5 // pred_check
        _
      $region10: #{tpu_custom_call.1} parent=5 // pred_check_branch
        %347 = sbr.rel (%p344) target = $region12
      $region11: #{tpu_custom_call.1} parent=5 // pred_region
        %s348 = ssub.s32 %s25, 1
        // Predicated region
        $region13: #{tpu_custom_call.1} parent=11 // pred_check
          %p349 = pneg %p98
        $region14: #{tpu_custom_call.1} parent=11 // pred_check_branch
          %351 = sbr.rel (%p349) target = $region16
        $region15: #{tpu_custom_call.1} parent=11 // pred_region
          %353 = vsyncadd [#allocation3], 0
          %s354 = sshll.u32 %s2, 4
          %s355 = int_to_ptr.hbm [resolvable:$true] %s354
          %s356 = sshll.u32 [#allocation2], 4
          %s357 = int_to_ptr.vmem [resolvable:$true] %s356
          %362 = dma.hbm_to_vmem [thread:$0]  %s355, 2048, %s357, [#allocation3], 128, 128, 8
        $region16: #{tpu_custom_call.1} parent=11 // pred_fallthru
          _
        // Predicated region
        $region17: #{tpu_custom_call.1} parent=11 // pred_check
          %p363 = pneg %p119
        $region18: #{tpu_custom_call.1} parent=11 // pred_check_branch
          %365 = sbr.rel (%p363) target = $region20
        $region19: #{tpu_custom_call.1} parent=11 // pred_region
          _
        $region20: #{tpu_custom_call.1} parent=11 // pred_fallthru
          _
        // Predicated region
        $region21: #{tpu_custom_call.1} parent=11 // pred_check
          %p366 = pneg %p140
        $region22: #{tpu_custom_call.1} parent=11 // pred_check_branch
          %368 = sbr.rel (%p366) target = $region24
        $region23: #{tpu_custom_call.1} parent=11 // pred_region
          _
        $region24: #{tpu_custom_call.1} parent=11 // pred_fallthru
          _
        // Predicated region
        $region25: #{tpu_custom_call.1} parent=11 // pred_check
          %p369 = pneg %p161
        $region26: #{tpu_custom_call.1} parent=11 // pred_check_branch
          %371 = sbr.rel (%p369) target = $region28
        $region27: #{tpu_custom_call.1} parent=11 // pred_region
          %373 = vsyncadd [#allocation6], 0
          %s374 = sshll.u32 %s5, 4
          %s375 = int_to_ptr.hbm [resolvable:$true] %s374
          %s376 = sshll.u32 [#allocation5], 4
          %s377 = int_to_ptr.vmem [resolvable:$true] %s376
          %382 = dma.hbm_to_vmem [thread:$0]  %s375, 4096, %s377, [#allocation6], 128, 128, 8
        $region28: #{tpu_custom_call.1} parent=11 // pred_fallthru
          _
        // Predicated region
        $region29: #{tpu_custom_call.1} parent=11 // pred_check
          %p383 = pneg %p182
        $region30: #{tpu_custom_call.1} parent=11 // pred_check_branch
          %385 = sbr.rel (%p383) target = $region32
        $region31: #{tpu_custom_call.1} parent=11 // pred_region
          _
        $region32: #{tpu_custom_call.1} parent=11 // pred_fallthru
          _
        // Predicated region
        $region33: #{tpu_custom_call.1} parent=11 // pred_check
          %p386 = pneg %p203
        $region34: #{tpu_custom_call.1} parent=11 // pred_check_branch
          %388 = sbr.rel (%p386) target = $region36
        $region35: #{tpu_custom_call.1} parent=11 // pred_region
          %390 = vsyncadd [#allocation6], 0
          %s391 = sshll.u32 %s7, 4
          %s392 = int_to_ptr.hbm [resolvable:$true] %s391
          %s393 = sshll.u32 [#allocation7], 4
          %s394 = int_to_ptr.vmem [resolvable:$true] %s393
          %399 = dma.hbm_to_vmem [thread:$0]  %s392, 2048, %s394, [#allocation6], 128, 128, 8
        $region36: #{tpu_custom_call.1} parent=11 // pred_fallthru
          _
        // Predicated region
        $region37: #{tpu_custom_call.1} parent=11 // pred_check
          %p400 = pneg %p224
        $region38: #{tpu_custom_call.1} parent=11 // pred_check_branch
          %402 = sbr.rel (%p400) target = $region40
        $region39: #{tpu_custom_call.1} parent=11 // pred_region
          _
        $region40: #{tpu_custom_call.1} parent=11 // pred_fallthru
          _
        // Predicated region
        $region41: #{tpu_custom_call.1} parent=11 // pred_check
          %p403 = pneg %p245
        $region42: #{tpu_custom_call.1} parent=11 // pred_check_branch
          %405 = sbr.rel (%p403) target = $region44
        $region43: #{tpu_custom_call.1} parent=11 // pred_region
          _
        $region44: #{tpu_custom_call.1} parent=11 // pred_fallthru
          _
        // Predicated region
        $region45: #{tpu_custom_call.1} parent=11 // pred_check
          %p406 = pneg %p266
        $region46: #{tpu_custom_call.1} parent=11 // pred_check_branch
          %408 = sbr.rel (%p406) target = $region48
        $region47: #{tpu_custom_call.1} parent=11 // pred_region
          _
        $region48: #{tpu_custom_call.1} parent=11 // pred_fallthru
          _
        // Predicated region
        $region49: #{tpu_custom_call.1} parent=11 // pred_check
          %p409 = pneg %p287
        $region50: #{tpu_custom_call.1} parent=11 // pred_check_branch
          %411 = sbr.rel (%p409) target = $region52
        $region51: #{tpu_custom_call.1} parent=11 // pred_region
          %413 = vsyncadd [#allocation9], 0
          %s414 = sshll.u32 %s11, 4
          %s415 = int_to_ptr.hbm [resolvable:$true] %s414
          %s416 = sshll.u32 [#allocation8], 4
          %s417 = int_to_ptr.vmem [resolvable:$true] %s416
          %422 = dma.hbm_to_vmem [thread:$0]  %s415, 2048, %s417, [#allocation9], 128, 128, 8
        $region52: #{tpu_custom_call.1} parent=11 // pred_fallthru
          _
        // Predicated region
        $region53: #{tpu_custom_call.1} parent=11 // pred_check
          %p423 = pneg %p308
        $region54: #{tpu_custom_call.1} parent=11 // pred_check_branch
          %425 = sbr.rel (%p423) target = $region56
        $region55: #{tpu_custom_call.1} parent=11 // pred_region
          _
        $region56: #{tpu_custom_call.1} parent=11 // pred_fallthru
          _
      $region12: #{tpu_custom_call.1} parent=5 // pred_fallthru
        _
      %p426 = scmp.lt.s32.totalorder %s25, 2
      // Predicated region
      $region57: #{tpu_custom_call.1} parent=5 // pred_check
        %p427 = pneg %p426
      $region58: #{tpu_custom_call.1} parent=5 // pred_check_branch
        %429 = sbr.rel (%p427) target = $region60
      $region59: #{tpu_custom_call.1} parent=5 // pred_region
        // Predicated region
        $region61: #{tpu_custom_call.1} parent=59 // pred_check
          %p430 = pneg %p45
        $region62: #{tpu_custom_call.1} parent=59 // pred_check_branch
          %432 = sbr.rel (%p430) target = $region64
        $region63: #{tpu_custom_call.1} parent=59 // pred_region
          %s433 = smul.u32 2, %s25
          %p434 = scmp.lt.s32.totalorder %s433, 3
          %s435 = scalar_select %p434, %s433, 3
          %s436 = smul.addr %s435, 8
          %s437 = scalar_lea.vmem %s0, %s436
          %s438 = smul.u32 2, %s25
        $region64: #{tpu_custom_call.1} parent=59 // pred_fallthru
          _
        // Predicated region
        $region65: #{tpu_custom_call.1} parent=59 // pred_check
          %p439 = pneg %p71
        $region66: #{tpu_custom_call.1} parent=59 // pred_check_branch
          %441 = sbr.rel (%p439) target = $region68
        $region67: #{tpu_custom_call.1} parent=59 // pred_region
          %s442 = smul.u32 2, %s25
          %p443 = scmp.lt.s32.totalorder %s442, 3
          %s444 = scalar_select %p443, %s442, 3
          %s445 = smul.addr %s444, 8
          %s446 = scalar_lea.vmem %s1, %s445
          %s447 = smul.u32 2, %s25
        $region68: #{tpu_custom_call.1} parent=59 // pred_fallthru
          _
      $region60: #{tpu_custom_call.1} parent=5 // pred_fallthru
        _
      %p448 = scmp.le.s32.totalorder 1, %s25
      %p449 = scmp.lt.s32.totalorder %s25, 3
      %p450 = pnand %p448, %p449
      %p451 = pneg %p450
      // Predicated region
      $region69: #{tpu_custom_call.1} parent=5 // pred_check
        _
      $region70: #{tpu_custom_call.1} parent=5 // pred_check_branch
        %453 = sbr.rel (%p450) target = $region72
      $region71: #{tpu_custom_call.1} parent=5 // pred_region
        %s454 = ssub.s32 %s25, 1
        // Predicated region
        $region73: #{tpu_custom_call.1} parent=71 // pred_check
          %p455 = pneg %p98
        $region74: #{tpu_custom_call.1} parent=71 // pred_check_branch
          %457 = sbr.rel (%p455) target = $region76
        $region75: #{tpu_custom_call.1} parent=71 // pred_region
          %459 = dma.done [#allocation3], 2048
        $region76: #{tpu_custom_call.1} parent=71 // pred_fallthru
          _
        // Predicated region
        $region77: #{tpu_custom_call.1} parent=71 // pred_check
          %p460 = pneg %p161
        $region78: #{tpu_custom_call.1} parent=71 // pred_check_branch
          %462 = sbr.rel (%p460) target = $region80
        $region79: #{tpu_custom_call.1} parent=71 // pred_region
          %464 = dma.done [#allocation6], 4096
        $region80: #{tpu_custom_call.1} parent=71 // pred_fallthru
          _
        // Predicated region
        $region81: #{tpu_custom_call.1} parent=71 // pred_check
          %p465 = pneg %p203
        $region82: #{tpu_custom_call.1} parent=71 // pred_check_branch
          %467 = sbr.rel (%p465) target = $region84
        $region83: #{tpu_custom_call.1} parent=71 // pred_region
          %469 = dma.done [#allocation6], 2048
        $region84: #{tpu_custom_call.1} parent=71 // pred_fallthru
          _
        // Predicated region
        $region85: #{tpu_custom_call.1} parent=71 // pred_check
          %p470 = pneg %p287
        $region86: #{tpu_custom_call.1} parent=71 // pred_check_branch
          %472 = sbr.rel (%p470) target = $region88
        $region87: #{tpu_custom_call.1} parent=71 // pred_region
          %474 = dma.done [#allocation9], 2048
        $region88: #{tpu_custom_call.1} parent=71 // pred_fallthru
          _
        %s475 = smul.u32 2, %s30
        %p476 = scmp.lt.s32.totalorder %s475, 3
        %s477 = scalar_select %p476, %s475, 3
        %s478 = smul.addr %s477, 8
        %s479 = scalar_lea.vmem %s0, %s478
        %p480 = pneg %p51
        %p481 = pneg %p48
        %s482 = smul.u32 2, %s30
        %p483 = scmp.lt.s32.totalorder %s482, 3
        %s484 = scalar_select %p483, %s482, 3
        %s485 = smul.addr %s484, 8
        %s486 = scalar_lea.vmem %s1, %s485
        %p487 = pneg %p77
        %p488 = pneg %p74
        %p489 = pneg %p98
        %p490 = pneg %p95
        %p491 = pneg %p119
        %p492 = pneg %p116
        %p493 = pneg %p140
        %p494 = pneg %p137
        %p495 = pneg %p161
        %p496 = pneg %p158
        %p497 = pneg %p182
        %p498 = pneg %p179
        %p499 = pneg %p203
        %p500 = pneg %p200
        %p501 = pneg %p224
        %p502 = pneg %p221
        %p503 = pneg %p245
        %p504 = pneg %p242
        %p505 = pneg %p266
        %p506 = pneg %p263
        %p507 = pneg %p287
        %p508 = pneg %p284
        %p509 = pneg %p308
        %p510 = pneg %p305
        %p511 = pneg %p334
        %p512 = pneg %p331
        %s513 = sand.u32 %s321, 1
        %s514 = scalar_lea.sflag [#allocation4], %s513
        %s515 = sand.u32 %s321, 1
        %s516 = smul.addr %s515, 16
        %s517 = scalar_lea.vmem [#allocation10], %s516
        %s518 = smul.u32 2, %s30
        %p519 = scmp.lt.s32.totalorder %s518, 3
        %s520 = scalar_select %p519, %s518, 3
        %s521 = smul.addr %s520, 8
        %s522 = scalar_lea.vmem %s0, %s521
        %s523 = smul.u32 2, %s30
        %s524 = smul.u32 2, %s30
        %p525 = scmp.lt.s32.totalorder %s524, 3
        %s526 = scalar_select %p525, %s524, 3
        %s527 = smul.addr %s526, 8
        %s528 = scalar_lea.vmem %s1, %s527
        %s529 = smul.u32 2, %s30
        %s530 = smul.u32 2, %s30
        %v531 = vld [vmem:[%s522] sm:$0xff]
        %v532 = vld [vmem:[%s522 + $0x8] sm:$0xff]
        %v533 = vlaneseq
        %v534 = vand.u32 %v533, 127
        %535 = vset.pattern.permute.xlu0 0
        %536 = vperm.xlu0 %535, %v531
        %v537 = vpop.permute.xlu0 %536
        %538 = vset.pattern.permute.xlu0 0
        %539 = vperm.xlu0 %538, %v532
        %v540 = vpop.permute.xlu0 %539
        %vm541 = vcmp.eq.s32.totalorder %v534, %v537
        %vm542 = vcmp.eq.s32.totalorder %v534, %v540
        %v543 = vsel %vm541, 1, 0
        %v544 = vsel %vm542, 1, 0
        %v545 = vcvt.s32.f32 %v543
        %v546 = vcvt.s32.f32 %v544
        %v547 = vld [vmem:[#allocation2] sm:$0xff]
        %v548 = vld [vmem:[#allocation2 + $0x8] sm:$0xff]
        %v549 = vld [vmem:[#allocation2 + $0x10] sm:$0xff]
        %v550 = vld [vmem:[#allocation2 + $0x18] sm:$0xff]
        %v551 = vld [vmem:[#allocation2 + $0x20] sm:$0xff]
        %v552 = vld [vmem:[#allocation2 + $0x28] sm:$0xff]
        %v553 = vld [vmem:[#allocation2 + $0x30] sm:$0xff]
        %v554 = vld [vmem:[#allocation2 + $0x38] sm:$0xff]
        %v555 = vld [vmem:[#allocation2 + $0x40] sm:$0xff]
        %v556 = vld [vmem:[#allocation2 + $0x48] sm:$0xff]
        %v557 = vld [vmem:[#allocation2 + $0x50] sm:$0xff]
        %v558 = vld [vmem:[#allocation2 + $0x58] sm:$0xff]
        %v559 = vld [vmem:[#allocation2 + $0x60] sm:$0xff]
        %v560 = vld [vmem:[#allocation2 + $0x68] sm:$0xff]
        %v561 = vld [vmem:[#allocation2 + $0x70] sm:$0xff]
        %v562 = vld [vmem:[#allocation2 + $0x78] sm:$0xff]
        %563 = vmatpush.msra.mxu0 %v562
        %564 = vmatpush.msra.mxu0 %v561
        %565 = vmatpush.msra.mxu0 %v560
        %566 = vmatpush.msra.mxu0 %v559
        %567 = vmatpush.msra.mxu0 %v558
        %568 = vmatpush.msra.mxu0 %v557
        %569 = vmatpush.msra.mxu0 %v556
        %570 = vmatpush.msra.mxu0 %v555
        %571 = vmatpush.msra.mxu0 %v554
        %572 = vmatpush.msra.mxu0 %v553
        %573 = vmatpush.msra.mxu0 %v552
        %574 = vmatpush.msra.mxu0 %v551
        %575 = vmatpush.msra.mxu0 %v550
        %576 = vmatpush.msra.mxu0 %v549
        %577 = vmatpush.msra.mxu0 %v548
        %578 = vmatpush.msra.mxu0 %v547
        %579 = vmatmul.f32.gmra.mxu0 %v545
        %v580 = vpop.f32.mrf.mxu0
        %v581 = vadd.f32 0.0, %v580
        %582 = vmatmul.f32.gmra.mxu0 %v546
        %v583 = vpop.f32.mrf.mxu0
        %v584 = vadd.f32 0.0, %v583
        %585 = vdwg.mxu0
        %v586 = vld [vmem:[%s528] sm:$0xff]
        %v587 = vld [vmem:[%s528 + $0x8] sm:$0xff]
        %v588 = vld [vmem:[%s3] sm:$0xff]
        %v589 = vld [vmem:[%s3 + $0x8] sm:$0xff]
        %v590 = vld [vmem:[%s4] sm:$0x1]
        %v592 = vperm.slane %v590, 0
        %vm594 = vcmask 130048
        %v596 = vsel %vm594, %v586, 0
        %v599 = vsel %vm594, %v587, 0
        %601 = vmatpush.msra.mxu0 0.0
        %602 = vmatpush.msra.mxu0 0.0
        %603 = vmatpush.msra.mxu0 0.0
        %604 = vmatpush.msra.mxu0 0.0
        %605 = vmatpush.msra.mxu0 0.0
        %606 = vmatpush.msra.mxu0 0.0
        %607 = vmatpush.msra.mxu0 0.0
        %608 = vmatpush.msra.mxu0 0.0
        %609 = vmatpush.msra.mxu0 0.0
        %610 = vmatpush.msra.mxu0 0.0
        %611 = vmatpush.msra.mxu0 0.0
        %612 = vmatpush.msra.mxu0 0.0
        %613 = vmatpush.msra.mxu0 0.0
        %614 = vmatpush.msra.mxu0 0.0
        %615 = vmatpush.msra.mxu0 %v589
        %616 = vmatpush.msra.mxu0 %v588
        %617 = vmatmul.f32.gmra.mxu0 %v596
        %v618 = vpop.f32.mrf.mxu0
        %v619 = vadd.f32 %v592, %v618
        %620 = vmatmul.f32.gmra.mxu0 %v599
        %v621 = vpop.f32.mrf.mxu0
        %v622 = vadd.f32 %v592, %v621
        %623 = vdwg.mxu0
        %v624 = vld [vmem:[#allocation5] sm:$0xff]
        %v625 = vld [vmem:[#allocation5 + $0x8] sm:$0xff]
        %v626 = vld [vmem:[#allocation5 + $0x10] sm:$0xff]
        %v627 = vld [vmem:[#allocation5 + $0x18] sm:$0xff]
        %v628 = vld [vmem:[#allocation5 + $0x20] sm:$0xff]
        %v629 = vld [vmem:[#allocation5 + $0x28] sm:$0xff]
        %v630 = vld [vmem:[#allocation5 + $0x30] sm:$0xff]
        %v631 = vld [vmem:[#allocation5 + $0x38] sm:$0xff]
        %v632 = vld [vmem:[#allocation5 + $0x40] sm:$0xff]
        %v633 = vld [vmem:[#allocation5 + $0x48] sm:$0xff]
        %v634 = vld [vmem:[#allocation5 + $0x50] sm:$0xff]
        %v635 = vld [vmem:[#allocation5 + $0x58] sm:$0xff]
        %v636 = vld [vmem:[#allocation5 + $0x60] sm:$0xff]
        %v637 = vld [vmem:[#allocation5 + $0x68] sm:$0xff]
        %v638 = vld [vmem:[#allocation5 + $0x70] sm:$0xff]
        %v639 = vld [vmem:[#allocation5 + $0x78] sm:$0xff]
        %v640 = vld [vmem:[#allocation5 + $0x80] sm:$0xff]
        %v641 = vld [vmem:[#allocation5 + $0x88] sm:$0xff]
        %v642 = vld [vmem:[#allocation5 + $0x90] sm:$0xff]
        %v643 = vld [vmem:[#allocation5 + $0x98] sm:$0xff]
        %v644 = vld [vmem:[#allocation5 + $0xa0] sm:$0xff]
        %v645 = vld [vmem:[#allocation5 + $0xa8] sm:$0xff]
        %v646 = vld [vmem:[#allocation5 + $0xb0] sm:$0xff]
        %v647 = vld [vmem:[#allocation5 + $0xb8] sm:$0xff]
        %v648 = vld [vmem:[#allocation5 + $0xc0] sm:$0xff]
        %v649 = vld [vmem:[#allocation5 + $0xc8] sm:$0xff]
        %v650 = vld [vmem:[#allocation5 + $0xd0] sm:$0xff]
        %v651 = vld [vmem:[#allocation5 + $0xd8] sm:$0xff]
        %v652 = vld [vmem:[#allocation5 + $0xe0] sm:$0xff]
        %v653 = vld [vmem:[#allocation5 + $0xe8] sm:$0xff]
        %v654 = vld [vmem:[#allocation5 + $0xf0] sm:$0xff]
        %v655 = vld [vmem:[#allocation5 + $0xf8] sm:$0xff]
        %v656 = vld [vmem:[%s6] sm:$0x1]
        %v658 = vperm.slane %v656, 0
        %660 = vmatpush.msra.mxu0 %v639
        %661 = vmatpush.msra.mxu0 %v638
        %662 = vmatpush.msra.mxu0 %v637
        %663 = vmatpush.msra.mxu0 %v636
        %664 = vmatpush.msra.mxu0 %v635
        %665 = vmatpush.msra.mxu0 %v634
        %666 = vmatpush.msra.mxu0 %v633
        %667 = vmatpush.msra.mxu0 %v632
        %668 = vmatpush.msra.mxu0 %v631
        %669 = vmatpush.msra.mxu0 %v630
        %670 = vmatpush.msra.mxu0 %v629
        %671 = vmatpush.msra.mxu0 %v628
        %672 = vmatpush.msra.mxu0 %v627
        %673 = vmatpush.msra.mxu0 %v626
        %674 = vmatpush.msra.mxu0 %v625
        %675 = vmatpush.msra.mxu0 %v624
        %676 = vmatmul.f32.gmra.mxu0 %v581
        %v677 = vpop.f32.mrf.mxu0
        %v678 = vadd.f32 %v658, %v677
        %679 = vmatmul.f32.gmra.mxu0 %v584
        %v680 = vpop.f32.mrf.mxu0
        %v681 = vadd.f32 %v658, %v680
        %682 = vdwg.mxu0
        %683 = vmatpush.msra.mxu0 %v655
        %684 = vmatpush.msra.mxu0 %v654
        %685 = vmatpush.msra.mxu0 %v653
        %686 = vmatpush.msra.mxu0 %v652
        %687 = vmatpush.msra.mxu0 %v651
        %688 = vmatpush.msra.mxu0 %v650
        %689 = vmatpush.msra.mxu0 %v649
        %690 = vmatpush.msra.mxu0 %v648
        %691 = vmatpush.msra.mxu0 %v647
        %692 = vmatpush.msra.mxu0 %v646
        %693 = vmatpush.msra.mxu0 %v645
        %694 = vmatpush.msra.mxu0 %v644
        %695 = vmatpush.msra.mxu0 %v643
        %696 = vmatpush.msra.mxu0 %v642
        %697 = vmatpush.msra.mxu0 %v641
        %698 = vmatpush.msra.mxu0 %v640
        %699 = vmatmul.f32.gmra.mxu0 %v619
        %v700 = vpop.f32.mrf.mxu0
        %v701 = vadd.f32 %v678, %v700
        %702 = vmatmul.f32.gmra.mxu0 %v622
        %v703 = vpop.f32.mrf.mxu0
        %v704 = vadd.f32 %v681, %v703
        %705 = vdwg.mxu0
        %v706 = vxor.u32 %v701, 2147483648
        %v707 = vxor.u32 %v704, 2147483648
        %v708 = vmul.f32 %v706, 1.442695
        %v709 = vpow.pop %v708
        %v710 = vmul.f32 %v707, 1.442695
        %v711 = vpow.pop %v710
        %v712 = vadd.f32 %v709, 1.0
        %v713 = vadd.f32 %v711, 1.0
        %v714 = vrcp.pop %v712
        %v715 = vmul.f32 %v712, %v714
        %v716 = vsub.f32 1.0, %v715
        %v717 = vmul.f32 %v714, %v716
        %v718 = vadd.f32 %v714, %v717
        %vm719 = vweird.f32 %v712
        %vm720 = vweird.f32 %v714
        %vm721 = vmor %vm719, %vm720
        %v722 = vsel %vm721, %v714, %v718
        %v723 = vand.u32 2147483647, %v712
        %vm724 = vcmp.eq.f32.partialorder %v723, 8.507059e+37
        %v725 = vand.u32 %v712, 2147483648
        %v726 = vor.u32 1.1754944e-38, %v725
        %v727 = vsel %vm724, %v726, %v722
        %v728 = vmul.f32 1.0, %v727
        %v729 = vrcp.pop %v713
        %v730 = vmul.f32 %v713, %v729
        %v731 = vsub.f32 1.0, %v730
        %v732 = vmul.f32 %v729, %v731
        %v733 = vadd.f32 %v729, %v732
        %vm734 = vweird.f32 %v713
        %vm735 = vweird.f32 %v729
        %vm736 = vmor %vm734, %vm735
        %v737 = vsel %vm736, %v729, %v733
        %v738 = vand.u32 2147483647, %v713
        %vm739 = vcmp.eq.f32.partialorder %v738, 8.507059e+37
        %v740 = vand.u32 %v713, 2147483648
        %v741 = vor.u32 1.1754944e-38, %v740
        %v742 = vsel %vm739, %v741, %v737
        %v743 = vmul.f32 1.0, %v742
        %v744 = vsub.f32 %v581, %v619
        %v745 = vsub.f32 %v584, %v622
        %v746 = vmul.f32 %v728, %v744
        %v747 = vmul.f32 %v743, %v745
        %v748 = vadd.f32 %v619, %v746
        %v749 = vadd.f32 %v622, %v747
        %v750 = vld [vmem:[#allocation7] sm:$0xff]
        %v751 = vld [vmem:[#allocation7 + $0x8] sm:$0xff]
        %v752 = vld [vmem:[#allocation7 + $0x10] sm:$0xff]
        %v753 = vld [vmem:[#allocation7 + $0x18] sm:$0xff]
        %v754 = vld [vmem:[#allocation7 + $0x20] sm:$0xff]
        %v755 = vld [vmem:[#allocation7 + $0x28] sm:$0xff]
        %v756 = vld [vmem:[#allocation7 + $0x30] sm:$0xff]
        %v757 = vld [vmem:[#allocation7 + $0x38] sm:$0xff]
        %v758 = vld [vmem:[#allocation7 + $0x40] sm:$0xff]
        %v759 = vld [vmem:[#allocation7 + $0x48] sm:$0xff]
        %v760 = vld [vmem:[#allocation7 + $0x50] sm:$0xff]
        %v761 = vld [vmem:[#allocation7 + $0x58] sm:$0xff]
        %v762 = vld [vmem:[#allocation7 + $0x60] sm:$0xff]
        %v763 = vld [vmem:[#allocation7 + $0x68] sm:$0xff]
        %v764 = vld [vmem:[#allocation7 + $0x70] sm:$0xff]
        %v765 = vld [vmem:[#allocation7 + $0x78] sm:$0xff]
        %v766 = vld [vmem:[%s8] sm:$0x1]
        %v768 = vperm.slane %v766, 0
        %770 = vmatpush.msra.mxu0 %v765
        %771 = vmatpush.msra.mxu0 %v764
        %772 = vmatpush.msra.mxu0 %v763
        %773 = vmatpush.msra.mxu0 %v762
        %774 = vmatpush.msra.mxu0 %v761
        %775 = vmatpush.msra.mxu0 %v760
        %776 = vmatpush.msra.mxu0 %v759
        %777 = vmatpush.msra.mxu0 %v758
        %778 = vmatpush.msra.mxu0 %v757
        %779 = vmatpush.msra.mxu0 %v756
        %780 = vmatpush.msra.mxu0 %v755
        %781 = vmatpush.msra.mxu0 %v754
        %782 = vmatpush.msra.mxu0 %v753
        %783 = vmatpush.msra.mxu0 %v752
        %784 = vmatpush.msra.mxu0 %v751
        %785 = vmatpush.msra.mxu0 %v750
        %786 = vmatmul.f32.gmra.mxu0 %v748
        %v787 = vpop.f32.mrf.mxu0
        %v788 = vadd.f32 %v768, %v787
        %789 = vmatmul.f32.gmra.mxu0 %v749
        %v790 = vpop.f32.mrf.mxu0
        %v791 = vadd.f32 %v768, %v790
        %792 = vdwg.mxu0
        %v793 = vxor.u32 %v788, 2147483648
        %v794 = vxor.u32 %v791, 2147483648
        %v795 = vmul.f32 %v793, 1.442695
        %v796 = vpow.pop %v795
        %v797 = vmul.f32 %v794, 1.442695
        %v798 = vpow.pop %v797
        %v799 = vadd.f32 %v796, 1.0
        %v800 = vadd.f32 %v798, 1.0
        %v801 = vrcp.pop %v799
        %v802 = vmul.f32 %v799, %v801
        %v803 = vsub.f32 1.0, %v802
        %v804 = vmul.f32 %v801, %v803
        %v805 = vadd.f32 %v801, %v804
        %vm806 = vweird.f32 %v799
        %vm807 = vweird.f32 %v801
        %vm808 = vmor %vm806, %vm807
        %v809 = vsel %vm808, %v801, %v805
        %v810 = vand.u32 2147483647, %v799
        %vm811 = vcmp.eq.f32.partialorder %v810, 8.507059e+37
        %v812 = vand.u32 %v799, 2147483648
        %v813 = vor.u32 1.1754944e-38, %v812
        %v814 = vsel %vm811, %v813, %v809
        %v815 = vmul.f32 1.0, %v814
        %v816 = vrcp.pop %v800
        %v817 = vmul.f32 %v800, %v816
        %v818 = vsub.f32 1.0, %v817
        %v819 = vmul.f32 %v816, %v818
        %v820 = vadd.f32 %v816, %v819
        %vm821 = vweird.f32 %v800
        %vm822 = vweird.f32 %v816
        %vm823 = vmor %vm821, %vm822
        %v824 = vsel %vm823, %v816, %v820
        %v825 = vand.u32 2147483647, %v800
        %vm826 = vcmp.eq.f32.partialorder %v825, 8.507059e+37
        %v827 = vand.u32 %v800, 2147483648
        %v828 = vor.u32 1.1754944e-38, %v827
        %v829 = vsel %vm826, %v828, %v824
        %v830 = vmul.f32 1.0, %v829
        %v831 = vmul.f32 %v788, %v815
        %v832 = vmul.f32 %v791, %v830
        %833 = vadd.xlane.f32.xlu0 %v831
        %v834 = vpop.xlane.xlu0 %833
        %835 = vadd.xlane.f32.xlu0 %v832
        %v836 = vpop.xlane.xlu0 %835
        %v837 = vmul.f32 %v834, 0.03125
        %v838 = vmul.f32 %v836, 0.03125
        %v839 = vsub.f32 %v831, %v837
        %v840 = vsub.f32 %v832, %v838
        %vm841 = vcmp.lt.s32.totalorder %v534, 32
        %v842 = vsel %vm841, %v839, 0.0
        %v843 = vsel %vm841, %v840, 0.0
        %v844 = vmul.f32 %v842, %v842
        %v845 = vmul.f32 %v843, %v843
        %846 = vadd.xlane.f32.xlu0 %v844
        %v847 = vpop.xlane.xlu0 %846
        %848 = vadd.xlane.f32.xlu0 %v845
        %v849 = vpop.xlane.xlu0 %848
        %v850 = vmul.f32 %v847, 0.03125
        %v851 = vmul.f32 %v849, 0.03125
        %v852 = vadd.f32 %v850, 1e-05
        %v853 = vadd.f32 %v851, 1e-05
        %v854 = vrsqrt.pop %v852
        %v855 = vmul.f32 %v854, %v852
        %v856 = vmul.f32 %v855, %v854
        %v857 = vmul.f32 0.5, %v856
        %v858 = vsub.f32 1.5, %v857
        %v859 = vmul.f32 %v854, %v858
        %vm860 = vweird.f32 %v852
        %vm861 = vweird.f32 %v854
        %vm862 = vmor %vm860, %vm861
        %v863 = vsel %vm862, %v854, %v859
        %v864 = vrsqrt.pop %v853
        %v865 = vmul.f32 %v864, %v853
        %v866 = vmul.f32 %v865, %v864
        %v867 = vmul.f32 0.5, %v866
        %v868 = vsub.f32 1.5, %v867
        %v869 = vmul.f32 %v864, %v868
        %vm870 = vweird.f32 %v853
        %vm871 = vweird.f32 %v864
        %vm872 = vmor %vm870, %vm871
        %v873 = vsel %vm872, %v864, %v869
        %v874 = vmul.f32 %v842, %v863
        %v875 = vmul.f32 %v843, %v873
        %v876 = vld [vmem:[%s9] sm:$0x1]
        %v878 = vperm.slane %v876, 0
        %v880 = vmul.f32 %v874, %v878
        %v881 = vmul.f32 %v875, %v878
        %v882 = vld [vmem:[%s10] sm:$0x1]
        %v884 = vperm.slane %v882, 0
        %v886 = vadd.f32 %v880, %v884
        %v887 = vadd.f32 %v881, %v884
        %v888 = vld [vmem:[#allocation8] sm:$0xff]
        %v889 = vld [vmem:[#allocation8 + $0x8] sm:$0xff]
        %v890 = vld [vmem:[#allocation8 + $0x10] sm:$0xff]
        %v891 = vld [vmem:[#allocation8 + $0x18] sm:$0xff]
        %v892 = vld [vmem:[#allocation8 + $0x20] sm:$0xff]
        %v893 = vld [vmem:[#allocation8 + $0x28] sm:$0xff]
        %v894 = vld [vmem:[#allocation8 + $0x30] sm:$0xff]
        %v895 = vld [vmem:[#allocation8 + $0x38] sm:$0xff]
        %v896 = vld [vmem:[#allocation8 + $0x40] sm:$0xff]
        %v897 = vld [vmem:[#allocation8 + $0x48] sm:$0xff]
        %v898 = vld [vmem:[#allocation8 + $0x50] sm:$0xff]
        %v899 = vld [vmem:[#allocation8 + $0x58] sm:$0xff]
        %v900 = vld [vmem:[#allocation8 + $0x60] sm:$0xff]
        %v901 = vld [vmem:[#allocation8 + $0x68] sm:$0xff]
        %v902 = vld [vmem:[#allocation8 + $0x70] sm:$0xff]
        %v903 = vld [vmem:[#allocation8 + $0x78] sm:$0xff]
        %v904 = vld [vmem:[%s12] sm:$0x1]
        %v906 = vperm.slane %v904, 0
        %908 = vmatpush.msra.mxu0 %v903
        %909 = vmatpush.msra.mxu0 %v902
        %910 = vmatpush.msra.mxu0 %v901
        %911 = vmatpush.msra.mxu0 %v900
        %912 = vmatpush.msra.mxu0 %v899
        %913 = vmatpush.msra.mxu0 %v898
        %914 = vmatpush.msra.mxu0 %v897
        %915 = vmatpush.msra.mxu0 %v896
        %916 = vmatpush.msra.mxu0 %v895
        %917 = vmatpush.msra.mxu0 %v894
        %918 = vmatpush.msra.mxu0 %v893
        %919 = vmatpush.msra.mxu0 %v892
        %920 = vmatpush.msra.mxu0 %v891
        %921 = vmatpush.msra.mxu0 %v890
        %922 = vmatpush.msra.mxu0 %v889
        %923 = vmatpush.msra.mxu0 %v888
        %924 = vmatmul.f32.gmra.mxu0 %v886
        %v925 = vpop.f32.mrf.mxu0
        %v926 = vadd.f32 %v906, %v925
        %927 = vmatmul.f32.gmra.mxu0 %v887
        %v928 = vpop.f32.mrf.mxu0
        %v929 = vadd.f32 %v906, %v928
        %930 = vdwg.mxu0
        %931 = vst [vmem:[%s517] sm:$0xff] %v926
        %932 = vst [vmem:[%s517 + $0x8] sm:$0xff] %v929
        %s933 = sand.u32 %s321, 1
        %s934 = scalar_lea.sflag [#allocation4], %s933
        %s935 = sand.u32 %s321, 1
        %s936 = smul.addr %s935, 16
        %s937 = scalar_lea.vmem [#allocation10], %s936
        // Predicated region
        $region89: #{tpu_custom_call.1} parent=71 // pred_check
          %p938 = pneg %p331
        $region90: #{tpu_custom_call.1} parent=71 // pred_check_branch
          %940 = sbr.rel (%p938) target = $region92
        $region91: #{tpu_custom_call.1} parent=71 // pred_region
          %s941 = smul.u32 2, %s30
          %943 = vsyncadd %s934, 0
          %s944 = smul.addr %s941, 8
          %s945 = scalar_lea.hbm %s13, %s944
          %s946 = sshll.u32 %s937, 4
          %s947 = int_to_ptr.vmem [resolvable:$true] %s946
          %s948 = sshll.u32 %s945, 4
          %s949 = int_to_ptr.hbm [resolvable:$true] %s948
          %954 = dma.vmem_to_hbm [thread:$0]  %s947, 256, %s949, %s934, 128, 128, 8
        $region92: #{tpu_custom_call.1} parent=71 // pred_fallthru
          _
      $region72: #{tpu_custom_call.1} parent=5 // pred_fallthru
        _
      %p955 = scmp.le.s32.totalorder 2, %s25
      // Predicated region
      $region93: #{tpu_custom_call.1} parent=5 // pred_check
        %p956 = pneg %p955
      $region94: #{tpu_custom_call.1} parent=5 // pred_check_branch
        %958 = sbr.rel (%p956) target = $region96
      $region95: #{tpu_custom_call.1} parent=5 // pred_region
        %s959 = ssub.s32 %s25, 2
        // Predicated region
        $region97: #{tpu_custom_call.1} parent=95 // pred_check
          %p960 = pneg %p337
        $region98: #{tpu_custom_call.1} parent=95 // pred_check_branch
          %962 = sbr.rel (%p960) target = $region100
        $region99: #{tpu_custom_call.1} parent=95 // pred_region
          %s963 = sand.u32 %s322, 1
          %s964 = scalar_lea.sflag [#allocation4], %s963
          %s965 = sand.u32 %s322, 1
          %s966 = smul.addr %s965, 16
          %s967 = scalar_lea.vmem [#allocation10], %s966
          %969 = dma.done %s964, 256
        $region100: #{tpu_custom_call.1} parent=95 // pred_fallthru
          _
      $region96: #{tpu_custom_call.1} parent=5 // pred_fallthru
        _
    $region6: #{tpu_custom_call.1} parent=1 // loop_footer
      %s29 = sadd.s32 1, %s25
    $region7: #{tpu_custom_call.1} parent=1 // loop_footer_branch
      %24 = sbr.rel target = $region3
    $region8: #{tpu_custom_call.1} parent=1 // loop_exit
      _
    %970 = vsyncpa [#allocation3], 1
    %s971 = scalar_lea.sflag [#allocation3], 1
    %972 = vsyncpa %s971, 1
    %973 = vsyncpa [#allocation6], 1
    %974 = vsyncpa [#allocation9], 1
    %975 = vsyncpa [#allocation4], 1
    %s976 = scalar_lea.sflag [#allocation4], 1
    %977 = vsyncpa %s976, 1

// kernel: tpu_custom_call.1
$region0: #{tpu_custom_call.1}
  #allocation0 [shape = 'u32[]', space=smem, size = 0x4, offset = 0x4, fixed_abs, tag = 'smem constant byte address 0x4 - core index']
  #allocation1 [shape = 'u32[72,128]{1,0:T(1,128)}', space=vmem, size = 0x9000, scoped, tag = 'internal scratch']
  %s0 = inlined_call_operand.vmem [shape: s32[32,1], index: 0, kind: input, shape index: {}]
  %s1 = inlined_call_operand.vmem [shape: f32[32,16], index: 1, kind: input, shape index: {}]
  %s2 = inlined_call_operand.hbm [shape: f32[128,128], index: 2, kind: input, shape index: {}]
  %s3 = inlined_call_operand.vmem [shape: f32[16,128], index: 3, kind: input, shape index: {}]
  %s4 = inlined_call_operand.vmem [shape: f32[1,128], index: 4, kind: input, shape index: {}]
  %s5 = inlined_call_operand.hbm [shape: f32[256,128], index: 5, kind: input, shape index: {}]
  %s6 = inlined_call_operand.vmem [shape: f32[1,128], index: 6, kind: input, shape index: {}]
  %s7 = inlined_call_operand.hbm [shape: f32[128,128], index: 7, kind: input, shape index: {}]
  %s8 = inlined_call_operand.vmem [shape: f32[1,128], index: 8, kind: input, shape index: {}]
  %s9 = inlined_call_operand.vmem [shape: f32[1,128], index: 9, kind: input, shape index: {}]
  %s10 = inlined_call_operand.vmem [shape: f32[1,128], index: 10, kind: input, shape index: {}]
  %s11 = inlined_call_operand.hbm [shape: f32[128,128], index: 11, kind: input, shape index: {}]
  %s12 = inlined_call_operand.vmem [shape: f32[1,128], index: 12, kind: input, shape index: {}]
  %s13 = inlined_call_operand.hbm [shape: f32[32,128], index: 13, kind: output, shape index: {}]
  %s14 = sld [smem:[#allocation0]]
  $region101: #{tpu_custom_call.1} parent=0
    _
  %s16 = ssub.s32 1, %s14
  %s17 = scalar_select 0, %s16, %s14
  $region1: #{tpu_custom_call.1} parent=0
    #allocation2 [shape = 'u8[65536]{0}', space=vmem, size = 0x10000, scoped, tag = 'input window, operand 2, single buffered']
    #allocation3 [shape = 's32[2]{0}', space=sflag, size = 0x8, scoped, tag = 'scoped memory for tpu_custom_call.1']
    #allocation4 [shape = 's32[2]{0}', space=sflag, size = 0x8, scoped, tag = 'scoped memory for tpu_custom_call.1']
    #allocation5 [shape = 'u8[131072]{0}', space=vmem, size = 0x20000, scoped, tag = 'input window, operand 5, single buffered']
    #allocation6 [shape = 's32[1]{0}', space=sflag, size = 0x4, scoped, tag = 'scoped memory for tpu_custom_call.1']
    #allocation7 [shape = 'u8[65536]{0}', space=vmem, size = 0x10000, scoped, tag = 'input window, operand 7, single buffered']
    #allocation8 [shape = 'u8[65536]{0}', space=vmem, size = 0x10000, scoped, tag = 'input window, operand 11, single buffered']
    #allocation9 [shape = 's32[1]{0}', space=sflag, size = 0x4, scoped, tag = 'scoped memory for tpu_custom_call.1']
    #allocation10 [shape = 'u8[16384]{0}', space=vmem, size = 0x4000, scoped, tag = 'output window, operand 0']
    %18 = vsyncpa [#allocation3], 0
    %19 = vsyncpa [#allocation6], 0
    %20 = vsyncpa [#allocation9], 0
    %21 = vsyncpa [#allocation4], 0
    %s22 = scalar_lea.sflag [#allocation4], 1
    %23 = vsyncpa %s22, 0
    loop: start=0, step=1, limit=4
    $region2: #{tpu_custom_call.1} parent=1 // loop_pre_header
      _
    $region3: #{tpu_custom_call.1} parent=1 // loop_header
      %s25 = sphi 0, %s29
      %p26 = scmp.ge.s32.totalorder %s25, 4
      %s35 = sphi 0, %s37
      %s38 = sphi 0, %s35
      %s39 = sphi 0, %s38
      %s55 = sphi 0, %s39
      %s61 = sphi 0, %s63
      %s64 = sphi 0, %s61
      %s65 = sphi 0, %s64
      %s81 = sphi 0, %s65
      %s85 = sphi 0, %s85
      %s87 = sphi 0, %s85
      %s88 = sphi 0, %s87
      %s102 = sphi 0, %s88
      %s106 = sphi 0, %s106
      %s108 = sphi 0, %s106
      %s109 = sphi 0, %s108
      %s123 = sphi 0, %s109
      %s127 = sphi 0, %s127
      %s129 = sphi 0, %s127
      %s130 = sphi 0, %s129
      %s144 = sphi 0, %s130
      %s148 = sphi 0, %s148
      %s150 = sphi 0, %s148
      %s151 = sphi 0, %s150
      %s165 = sphi 0, %s151
      %s169 = sphi 0, %s169
      %s171 = sphi 0, %s169
      %s172 = sphi 0, %s171
      %s186 = sphi 0, %s172
      %s190 = sphi 0, %s190
      %s192 = sphi 0, %s190
      %s193 = sphi 0, %s192
      %s207 = sphi 0, %s193
      %s211 = sphi 0, %s211
      %s213 = sphi 0, %s211
      %s214 = sphi 0, %s213
      %s228 = sphi 0, %s214
      %s232 = sphi 0, %s232
      %s234 = sphi 0, %s232
      %s235 = sphi 0, %s234
      %s249 = sphi 0, %s235
      %s253 = sphi 0, %s253
      %s255 = sphi 0, %s253
      %s256 = sphi 0, %s255
      %s270 = sphi 0, %s256
      %s274 = sphi 0, %s274
      %s276 = sphi 0, %s274
      %s277 = sphi 0, %s276
      %s291 = sphi 0, %s277
      %s295 = sphi 0, %s295
      %s297 = sphi 0, %s295
      %s298 = sphi 0, %s297
      %s312 = sphi 0, %s298
      %s318 = sphi 0, %s320
      %s321 = sphi 0, %s318
      %s322 = sphi 0, %s321
      %s338 = sphi 0, %s322
    $region4: #{tpu_custom_call.1} parent=1 // loop_header_branch
      %28 = sbr.rel (%p26) target = $region8
    $region5: #{tpu_custom_call.1} parent=1 // loop_body
      %s30 = ssub.s32 %s25, 1
      %s31 = ssub.s32 %s25, 2
      %s32 = sadd.s32 %s25, 1
      %s33 = ssub.s32 %s25, %s32
      %p34 = scmp.eq.s32.totalorder %s33, 0
      %s36 = sadd.s32 %s35, 1
      %s37 = scalar_select %p34, %s35, %s36
      %p40 = pneg %p34
      %p41 = scmp.eq.s32.totalorder %s25, 1
      %p42 = por %p40, %p41
      %p43 = scmp.ne.s32.totalorder %s35, %s38
      %p44 = scmp.eq.s32.totalorder %s25, 0
      %p45 = por %p43, %p44
      %p46 = scmp.ne.s32.totalorder %s35, %s38
      %p47 = scmp.eq.s32.totalorder %s30, 1
      %p48 = por %p46, %p47
      %p49 = scmp.ne.s32.totalorder %s38, %s39
      %p50 = scmp.eq.s32.totalorder %s30, 0
      %p51 = por %p49, %p50
      %p52 = scmp.ne.s32.totalorder %s38, %s39
      %p53 = scmp.eq.s32.totalorder %s31, 1
      %p54 = por %p52, %p53
      %p56 = scmp.ne.s32.totalorder %s39, %s55
      %p57 = scmp.eq.s32.totalorder %s31, 0
      %p58 = por %p56, %p57
      %s59 = ssub.s32 %s25, %s32
      %p60 = scmp.eq.s32.totalorder %s59, 0
      %s62 = sadd.s32 %s61, 1
      %s63 = scalar_select %p60, %s61, %s62
      %p66 = pneg %p60
      %p67 = scmp.eq.s32.totalorder %s25, 1
      %p68 = por %p66, %p67
      %p69 = scmp.ne.s32.totalorder %s61, %s64
      %p70 = scmp.eq.s32.totalorder %s25, 0
      %p71 = por %p69, %p70
      %p72 = scmp.ne.s32.totalorder %s61, %s64
      %p73 = scmp.eq.s32.totalorder %s30, 1
      %p74 = por %p72, %p73
      %p75 = scmp.ne.s32.totalorder %s64, %s65
      %p76 = scmp.eq.s32.totalorder %s30, 0
      %p77 = por %p75, %p76
      %p78 = scmp.ne.s32.totalorder %s64, %s65
      %p79 = scmp.eq.s32.totalorder %s31, 1
      %p80 = por %p78, %p79
      %p82 = scmp.ne.s32.totalorder %s65, %s81
      %p83 = scmp.eq.s32.totalorder %s31, 0
      %p84 = por %p82, %p83
      %s86 = sadd.s32 %s85, 1
      %p89 = scmp.eq.s32.totalorder %s25, 1
      %p90 = scmp.ne.s32.totalorder %s85, %s87
      %p91 = scmp.eq.s32.totalorder %s25, 0
      %p92 = por %p90, %p91
      %p93 = scmp.ne.s32.totalorder %s85, %s87
      %p94 = scmp.eq.s32.totalorder %s30, 1
      %p95 = por %p93, %p94
      %p96 = scmp.ne.s32.totalorder %s87, %s88
      %p97 = scmp.eq.s32.totalorder %s30, 0
      %p98 = por %p96, %p97
      %p99 = scmp.ne.s32.totalorder %s87, %s88
      %p100 = scmp.eq.s32.totalorder %s31, 1
      %p101 = por %p99, %p100
      %p103 = scmp.ne.s32.totalorder %s88, %s102
      %p104 = scmp.eq.s32.totalorder %s31, 0
      %p105 = por %p103, %p104
      %s107 = sadd.s32 %s106, 1
      %p110 = scmp.eq.s32.totalorder %s25, 1
      %p111 = scmp.ne.s32.totalorder %s106, %s108
      %p112 = scmp.eq.s32.totalorder %s25, 0
      %p113 = por %p111, %p112
      %p114 = scmp.ne.s32.totalorder %s106, %s108
      %p115 = scmp.eq.s32.totalorder %s30, 1
      %p116 = por %p114, %p115
      %p117 = scmp.ne.s32.totalorder %s108, %s109
      %p118 = scmp.eq.s32.totalorder %s30, 0
      %p119 = por %p117, %p118
      %p120 = scmp.ne.s32.totalorder %s108, %s109
      %p121 = scmp.eq.s32.totalorder %s31, 1
      %p122 = por %p120, %p121
      %p124 = scmp.ne.s32.totalorder %s109, %s123
      %p125 = scmp.eq.s32.totalorder %s31, 0
      %p126 = por %p124, %p125
      %s128 = sadd.s32 %s127, 1
      %p131 = scmp.eq.s32.totalorder %s25, 1
      %p132 = scmp.ne.s32.totalorder %s127, %s129
      %p133 = scmp.eq.s32.totalorder %s25, 0
      %p134 = por %p132, %p133
      %p135 = scmp.ne.s32.totalorder %s127, %s129
      %p136 = scmp.eq.s32.totalorder %s30, 1
      %p137 = por %p135, %p136
      %p138 = scmp.ne.s32.totalorder %s129, %s130
      %p139 = scmp.eq.s32.totalorder %s30, 0
      %p140 = por %p138, %p139
      %p141 = scmp.ne.s32.totalorder %s129, %s130
      %p142 = scmp.eq.s32.totalorder %s31, 1
      %p143 = por %p141, %p142
      %p145 = scmp.ne.s32.totalorder %s130, %s144
      %p146 = scmp.eq.s32.totalorder %s31, 0
      %p147 = por %p145, %p146
      %s149 = sadd.s32 %s148, 1
      %p152 = scmp.eq.s32.totalorder %s25, 1
      %p153 = scmp.ne.s32.totalorder %s148, %s150
      %p154 = scmp.eq.s32.totalorder %s25, 0
      %p155 = por %p153, %p154
      %p156 = scmp.ne.s32.totalorder %s148, %s150
      %p157 = scmp.eq.s32.totalorder %s30, 1
      %p158 = por %p156, %p157
      %p159 = scmp.ne.s32.totalorder %s150, %s151
      %p160 = scmp.eq.s32.totalorder %s30, 0
      %p161 = por %p159, %p160
      %p162 = scmp.ne.s32.totalorder %s150, %s151
      %p163 = scmp.eq.s32.totalorder %s31, 1
      %p164 = por %p162, %p163
      %p166 = scmp.ne.s32.totalorder %s151, %s165
      %p167 = scmp.eq.s32.totalorder %s31, 0
      %p168 = por %p166, %p167
      %s170 = sadd.s32 %s169, 1
      %p173 = scmp.eq.s32.totalorder %s25, 1
      %p174 = scmp.ne.s32.totalorder %s169, %s171
      %p175 = scmp.eq.s32.totalorder %s25, 0
      %p176 = por %p174, %p175
      %p177 = scmp.ne.s32.totalorder %s169, %s171
      %p178 = scmp.eq.s32.totalorder %s30, 1
      %p179 = por %p177, %p178
      %p180 = scmp.ne.s32.totalorder %s171, %s172
      %p181 = scmp.eq.s32.totalorder %s30, 0
      %p182 = por %p180, %p181
      %p183 = scmp.ne.s32.totalorder %s171, %s172
      %p184 = scmp.eq.s32.totalorder %s31, 1
      %p185 = por %p183, %p184
      %p187 = scmp.ne.s32.totalorder %s172, %s186
      %p188 = scmp.eq.s32.totalorder %s31, 0
      %p189 = por %p187, %p188
      %s191 = sadd.s32 %s190, 1
      %p194 = scmp.eq.s32.totalorder %s25, 1
      %p195 = scmp.ne.s32.totalorder %s190, %s192
      %p196 = scmp.eq.s32.totalorder %s25, 0
      %p197 = por %p195, %p196
      %p198 = scmp.ne.s32.totalorder %s190, %s192
      %p199 = scmp.eq.s32.totalorder %s30, 1
      %p200 = por %p198, %p199
      %p201 = scmp.ne.s32.totalorder %s192, %s193
      %p202 = scmp.eq.s32.totalorder %s30, 0
      %p203 = por %p201, %p202
      %p204 = scmp.ne.s32.totalorder %s192, %s193
      %p205 = scmp.eq.s32.totalorder %s31, 1
      %p206 = por %p204, %p205
      %p208 = scmp.ne.s32.totalorder %s193, %s207
      %p209 = scmp.eq.s32.totalorder %s31, 0
      %p210 = por %p208, %p209
      %s212 = sadd.s32 %s211, 1
      %p215 = scmp.eq.s32.totalorder %s25, 1
      %p216 = scmp.ne.s32.totalorder %s211, %s213
      %p217 = scmp.eq.s32.totalorder %s25, 0
      %p218 = por %p216, %p217
      %p219 = scmp.ne.s32.totalorder %s211, %s213
      %p220 = scmp.eq.s32.totalorder %s30, 1
      %p221 = por %p219, %p220
      %p222 = scmp.ne.s32.totalorder %s213, %s214
      %p223 = scmp.eq.s32.totalorder %s30, 0
      %p224 = por %p222, %p223
      %p225 = scmp.ne.s32.totalorder %s213, %s214
      %p226 = scmp.eq.s32.totalorder %s31, 1
      %p227 = por %p225, %p226
      %p229 = scmp.ne.s32.totalorder %s214, %s228
      %p230 = scmp.eq.s32.totalorder %s31, 0
      %p231 = por %p229, %p230
      %s233 = sadd.s32 %s232, 1
      %p236 = scmp.eq.s32.totalorder %s25, 1
      %p237 = scmp.ne.s32.totalorder %s232, %s234
      %p238 = scmp.eq.s32.totalorder %s25, 0
      %p239 = por %p237, %p238
      %p240 = scmp.ne.s32.totalorder %s232, %s234
      %p241 = scmp.eq.s32.totalorder %s30, 1
      %p242 = por %p240, %p241
      %p243 = scmp.ne.s32.totalorder %s234, %s235
      %p244 = scmp.eq.s32.totalorder %s30, 0
      %p245 = por %p243, %p244
      %p246 = scmp.ne.s32.totalorder %s234, %s235
      %p247 = scmp.eq.s32.totalorder %s31, 1
      %p248 = por %p246, %p247
      %p250 = scmp.ne.s32.totalorder %s235, %s249
      %p251 = scmp.eq.s32.totalorder %s31, 0
      %p252 = por %p250, %p251
      %s254 = sadd.s32 %s253, 1
      %p257 = scmp.eq.s32.totalorder %s25, 1
      %p258 = scmp.ne.s32.totalorder %s253, %s255
      %p259 = scmp.eq.s32.totalorder %s25, 0
      %p260 = por %p258, %p259
      %p261 = scmp.ne.s32.totalorder %s253, %s255
      %p262 = scmp.eq.s32.totalorder %s30, 1
      %p263 = por %p261, %p262
      %p264 = scmp.ne.s32.totalorder %s255, %s256
      %p265 = scmp.eq.s32.totalorder %s30, 0
      %p266 = por %p264, %p265
      %p267 = scmp.ne.s32.totalorder %s255, %s256
      %p268 = scmp.eq.s32.totalorder %s31, 1
      %p269 = por %p267, %p268
      %p271 = scmp.ne.s32.totalorder %s256, %s270
      %p272 = scmp.eq.s32.totalorder %s31, 0
      %p273 = por %p271, %p272
      %s275 = sadd.s32 %s274, 1
      %p278 = scmp.eq.s32.totalorder %s25, 1
      %p279 = scmp.ne.s32.totalorder %s274, %s276
      %p280 = scmp.eq.s32.totalorder %s25, 0
      %p281 = por %p279, %p280
      %p282 = scmp.ne.s32.totalorder %s274, %s276
      %p283 = scmp.eq.s32.totalorder %s30, 1
      %p284 = por %p282, %p283
      %p285 = scmp.ne.s32.totalorder %s276, %s277
      %p286 = scmp.eq.s32.totalorder %s30, 0
      %p287 = por %p285, %p286
      %p288 = scmp.ne.s32.totalorder %s276, %s277
      %p289 = scmp.eq.s32.totalorder %s31, 1
      %p290 = por %p288, %p289
      %p292 = scmp.ne.s32.totalorder %s277, %s291
      %p293 = scmp.eq.s32.totalorder %s31, 0
      %p294 = por %p292, %p293
      %s296 = sadd.s32 %s295, 1
      %p299 = scmp.eq.s32.totalorder %s25, 1
      %p300 = scmp.ne.s32.totalorder %s295, %s297
      %p301 = scmp.eq.s32.totalorder %s25, 0
      %p302 = por %p300, %p301
      %p303 = scmp.ne.s32.totalorder %s295, %s297
      %p304 = scmp.eq.s32.totalorder %s30, 1
      %p305 = por %p303, %p304
      %p306 = scmp.ne.s32.totalorder %s297, %s298
      %p307 = scmp.eq.s32.totalorder %s30, 0
      %p308 = por %p306, %p307
      %p309 = scmp.ne.s32.totalorder %s297, %s298
      %p310 = scmp.eq.s32.totalorder %s31, 1
      %p311 = por %p309, %p310
      %p313 = scmp.ne.s32.totalorder %s298, %s312
      %p314 = scmp.eq.s32.totalorder %s31, 0
      %p315 = por %p313, %p314
      %s316 = ssub.s32 %s25, %s32
      %p317 = scmp.eq.s32.totalorder %s316, 0
      %s319 = sadd.s32 %s318, 1
      %s320 = scalar_select %p317, %s318, %s319
      %p323 = pneg %p317
      %p324 = scmp.eq.s32.totalorder %s25, 1
      %p325 = por %p323, %p324
      %p326 = scmp.ne.s32.totalorder %s318, %s321
      %p327 = scmp.eq.s32.totalorder %s25, 0
      %p328 = por %p326, %p327
      %p329 = scmp.ne.s32.totalorder %s318, %s321
      %p330 = scmp.eq.s32.totalorder %s30, 1
      %p331 = por %p329, %p330
      %p332 = scmp.ne.s32.totalorder %s321, %s322
      %p333 = scmp.eq.s32.totalorder %s30, 0
      %p334 = por %p332, %p333
      %p335 = scmp.ne.s32.totalorder %s321, %s322
      %p336 = scmp.eq.s32.totalorder %s31, 1
      %p337 = por %p335, %p336
      %p339 = scmp.ne.s32.totalorder %s322, %s338
      %p340 = scmp.eq.s32.totalorder %s31, 0
      %p341 = por %p339, %p340
      %p342 = scmp.le.s32.totalorder 1, %s25
      %p343 = scmp.lt.s32.totalorder %s25, 3
      %p344 = pnand %p342, %p343
      %p345 = pneg %p344
      // Predicated region
      $region9: #{tpu_custom_call.1} parent=5 // pred_check
        _
      $region10: #{tpu_custom_call.1} parent=5 // pred_check_branch
        %347 = sbr.rel (%p344) target = $region12
      $region11: #{tpu_custom_call.1} parent=5 // pred_region
        %s348 = ssub.s32 %s25, 1
        // Predicated region
        $region13: #{tpu_custom_call.1} parent=11 // pred_check
          %p349 = pneg %p98
        $region14: #{tpu_custom_call.1} parent=11 // pred_check_branch
          %351 = sbr.rel (%p349) target = $region16
        $region15: #{tpu_custom_call.1} parent=11 // pred_region
          %353 = vsyncadd [#allocation3], 0
          %s354 = sshll.u32 %s2, 4
          %s355 = int_to_ptr.hbm [resolvable:$true] %s354
          %s356 = sshll.u32 [#allocation2], 4
          %s357 = int_to_ptr.vmem [resolvable:$true] %s356
          %362 = dma.hbm_to_vmem [thread:$0]  %s355, 2048, %s357, [#allocation3], 128, 128, 8
        $region16: #{tpu_custom_call.1} parent=11 // pred_fallthru
          _
        // Predicated region
        $region17: #{tpu_custom_call.1} parent=11 // pred_check
          %p363 = pneg %p119
        $region18: #{tpu_custom_call.1} parent=11 // pred_check_branch
          %365 = sbr.rel (%p363) target = $region20
        $region19: #{tpu_custom_call.1} parent=11 // pred_region
          _
        $region20: #{tpu_custom_call.1} parent=11 // pred_fallthru
          _
        // Predicated region
        $region21: #{tpu_custom_call.1} parent=11 // pred_check
          %p366 = pneg %p140
        $region22: #{tpu_custom_call.1} parent=11 // pred_check_branch
          %368 = sbr.rel (%p366) target = $region24
        $region23: #{tpu_custom_call.1} parent=11 // pred_region
          _
        $region24: #{tpu_custom_call.1} parent=11 // pred_fallthru
          _
        // Predicated region
        $region25: #{tpu_custom_call.1} parent=11 // pred_check
          %p369 = pneg %p161
        $region26: #{tpu_custom_call.1} parent=11 // pred_check_branch
          %371 = sbr.rel (%p369) target = $region28
        $region27: #{tpu_custom_call.1} parent=11 // pred_region
          %373 = vsyncadd [#allocation6], 0
          %s374 = sshll.u32 %s5, 4
          %s375 = int_to_ptr.hbm [resolvable:$true] %s374
          %s376 = sshll.u32 [#allocation5], 4
          %s377 = int_to_ptr.vmem [resolvable:$true] %s376
          %382 = dma.hbm_to_vmem [thread:$0]  %s375, 4096, %s377, [#allocation6], 128, 128, 8
        $region28: #{tpu_custom_call.1} parent=11 // pred_fallthru
          _
        // Predicated region
        $region29: #{tpu_custom_call.1} parent=11 // pred_check
          %p383 = pneg %p182
        $region30: #{tpu_custom_call.1} parent=11 // pred_check_branch
          %385 = sbr.rel (%p383) target = $region32
        $region31: #{tpu_custom_call.1} parent=11 // pred_region
          _
        $region32: #{tpu_custom_call.1} parent=11 // pred_fallthru
          _
        // Predicated region
        $region33: #{tpu_custom_call.1} parent=11 // pred_check
          %p386 = pneg %p203
        $region34: #{tpu_custom_call.1} parent=11 // pred_check_branch
          %388 = sbr.rel (%p386) target = $region36
        $region35: #{tpu_custom_call.1} parent=11 // pred_region
          %390 = vsyncadd [#allocation6], 0
          %s391 = sshll.u32 %s7, 4
          %s392 = int_to_ptr.hbm [resolvable:$true] %s391
          %s393 = sshll.u32 [#allocation7], 4
          %s394 = int_to_ptr.vmem [resolvable:$true] %s393
          %399 = dma.hbm_to_vmem [thread:$0]  %s392, 2048, %s394, [#allocation6], 128, 128, 8
        $region36: #{tpu_custom_call.1} parent=11 // pred_fallthru
          _
        // Predicated region
        $region37: #{tpu_custom_call.1} parent=11 // pred_check
          %p400 = pneg %p224
        $region38: #{tpu_custom_call.1} parent=11 // pred_check_branch
          %402 = sbr.rel (%p400) target = $region40
        $region39: #{tpu_custom_call.1} parent=11 // pred_region
          _
        $region40: #{tpu_custom_call.1} parent=11 // pred_fallthru
          _
        // Predicated region
        $region41: #{tpu_custom_call.1} parent=11 // pred_check
          %p403 = pneg %p245
        $region42: #{tpu_custom_call.1} parent=11 // pred_check_branch
          %405 = sbr.rel (%p403) target = $region44
        $region43: #{tpu_custom_call.1} parent=11 // pred_region
          _
        $region44: #{tpu_custom_call.1} parent=11 // pred_fallthru
          _
        // Predicated region
        $region45: #{tpu_custom_call.1} parent=11 // pred_check
          %p406 = pneg %p266
        $region46: #{tpu_custom_call.1} parent=11 // pred_check_branch
          %408 = sbr.rel (%p406) target = $region48
        $region47: #{tpu_custom_call.1} parent=11 // pred_region
          _
        $region48: #{tpu_custom_call.1} parent=11 // pred_fallthru
          _
        // Predicated region
        $region49: #{tpu_custom_call.1} parent=11 // pred_check
          %p409 = pneg %p287
        $region50: #{tpu_custom_call.1} parent=11 // pred_check_branch
          %411 = sbr.rel (%p409) target = $region52
        $region51: #{tpu_custom_call.1} parent=11 // pred_region
          %413 = vsyncadd [#allocation9], 0
          %s414 = sshll.u32 %s11, 4
          %s415 = int_to_ptr.hbm [resolvable:$true] %s414
          %s416 = sshll.u32 [#allocation8], 4
          %s417 = int_to_ptr.vmem [resolvable:$true] %s416
          %422 = dma.hbm_to_vmem [thread:$0]  %s415, 2048, %s417, [#allocation9], 128, 128, 8
        $region52: #{tpu_custom_call.1} parent=11 // pred_fallthru
          _
        // Predicated region
        $region53: #{tpu_custom_call.1} parent=11 // pred_check
          %p423 = pneg %p308
        $region54: #{tpu_custom_call.1} parent=11 // pred_check_branch
          %425 = sbr.rel (%p423) target = $region56
        $region55: #{tpu_custom_call.1} parent=11 // pred_region
          _
        $region56: #{tpu_custom_call.1} parent=11 // pred_fallthru
          _
      $region12: #{tpu_custom_call.1} parent=5 // pred_fallthru
        _
      %p426 = scmp.lt.s32.totalorder %s25, 2
      // Predicated region
      $region57: #{tpu_custom_call.1} parent=5 // pred_check
        %p427 = pneg %p426
      $region58: #{tpu_custom_call.1} parent=5 // pred_check_branch
        %429 = sbr.rel (%p427) target = $region60
      $region59: #{tpu_custom_call.1} parent=5 // pred_region
        // Predicated region
        $region61: #{tpu_custom_call.1} parent=59 // pred_check
          %p430 = pneg %p45
        $region62: #{tpu_custom_call.1} parent=59 // pred_check_branch
          %432 = sbr.rel (%p430) target = $region64
        $region63: #{tpu_custom_call.1} parent=59 // pred_region
          %s433 = smul.u32 2, %s25
          %p434 = scmp.lt.s32.totalorder %s433, 3
          %s435 = scalar_select %p434, %s433, 3
          %s436 = smul.addr %s435, 8
          %s437 = scalar_lea.vmem %s0, %s436
          %s438 = smul.u32 2, %s25
        $region64: #{tpu_custom_call.1} parent=59 // pred_fallthru
          _
        // Predicated region
        $region65: #{tpu_custom_call.1} parent=59 // pred_check
          %p439 = pneg %p71
        $region66: #{tpu_custom_call.1} parent=59 // pred_check_branch
          %441 = sbr.rel (%p439) target = $region68
        $region67: #{tpu_custom_call.1} parent=59 // pred_region
          %s442 = smul.u32 2, %s25
          %p443 = scmp.lt.s32.totalorder %s442, 3
          %s444 = scalar_select %p443, %s442, 3
          %s445 = smul.addr %s444, 8
          %s446 = scalar_lea.vmem %s1, %s445
          %s447 = smul.u32 2, %s25
        $region68: #{tpu_custom_call.1} parent=59 // pred_fallthru
          _
      $region60: #{tpu_custom_call.1} parent=5 // pred_fallthru
        _
      %p448 = scmp.le.s32.totalorder 1, %s25
      %p449 = scmp.lt.s32.totalorder %s25, 3
      %p450 = pnand %p448, %p449
      %p451 = pneg %p450
      // Predicated region
      $region69: #{tpu_custom_call.1} parent=5 // pred_check
        _
      $region70: #{tpu_custom_call.1} parent=5 // pred_check_branch
        %453 = sbr.rel (%p450) target = $region72
      $region71: #{tpu_custom_call.1} parent=5 // pred_region
        %s454 = ssub.s32 %s25, 1
        // Predicated region
        $region73: #{tpu_custom_call.1} parent=71 // pred_check
          %p455 = pneg %p98
        $region74: #{tpu_custom_call.1} parent=71 // pred_check_branch
          %457 = sbr.rel (%p455) target = $region76
        $region75: #{tpu_custom_call.1} parent=71 // pred_region
          %459 = dma.done [#allocation3], 2048
        $region76: #{tpu_custom_call.1} parent=71 // pred_fallthru
          _
        // Predicated region
        $region77: #{tpu_custom_call.1} parent=71 // pred_check
          %p460 = pneg %p161
        $region78: #{tpu_custom_call.1} parent=71 // pred_check_branch
          %462 = sbr.rel (%p460) target = $region80
        $region79: #{tpu_custom_call.1} parent=71 // pred_region
          %464 = dma.done [#allocation6], 4096
        $region80: #{tpu_custom_call.1} parent=71 // pred_fallthru
          _
        // Predicated region
        $region81: #{tpu_custom_call.1} parent=71 // pred_check
          %p465 = pneg %p203
        $region82: #{tpu_custom_call.1} parent=71 // pred_check_branch
          %467 = sbr.rel (%p465) target = $region84
        $region83: #{tpu_custom_call.1} parent=71 // pred_region
          %469 = dma.done [#allocation6], 2048
        $region84: #{tpu_custom_call.1} parent=71 // pred_fallthru
          _
        // Predicated region
        $region85: #{tpu_custom_call.1} parent=71 // pred_check
          %p470 = pneg %p287
        $region86: #{tpu_custom_call.1} parent=71 // pred_check_branch
          %472 = sbr.rel (%p470) target = $region88
        $region87: #{tpu_custom_call.1} parent=71 // pred_region
          %474 = dma.done [#allocation9], 2048
        $region88: #{tpu_custom_call.1} parent=71 // pred_fallthru
          _
        %s475 = smul.u32 2, %s30
        %p476 = scmp.lt.s32.totalorder %s475, 3
        %s477 = scalar_select %p476, %s475, 3
        %s478 = smul.addr %s477, 8
        %s479 = scalar_lea.vmem %s0, %s478
        %p480 = pneg %p51
        %p481 = pneg %p48
        %s482 = smul.u32 2, %s30
        %p483 = scmp.lt.s32.totalorder %s482, 3
        %s484 = scalar_select %p483, %s482, 3
        %s485 = smul.addr %s484, 8
        %s486 = scalar_lea.vmem %s1, %s485
        %p487 = pneg %p77
        %p488 = pneg %p74
        %p489 = pneg %p98
        %p490 = pneg %p95
        %p491 = pneg %p119
        %p492 = pneg %p116
        %p493 = pneg %p140
        %p494 = pneg %p137
        %p495 = pneg %p161
        %p496 = pneg %p158
        %p497 = pneg %p182
        %p498 = pneg %p179
        %p499 = pneg %p203
        %p500 = pneg %p200
        %p501 = pneg %p224
        %p502 = pneg %p221
        %p503 = pneg %p245
        %p504 = pneg %p242
        %p505 = pneg %p266
        %p506 = pneg %p263
        %p507 = pneg %p287
        %p508 = pneg %p284
        %p509 = pneg %p308
        %p510 = pneg %p305
        %p511 = pneg %p334
        %p512 = pneg %p331
        %s513 = sand.u32 %s321, 1
        %s514 = scalar_lea.sflag [#allocation4], %s513
        %s515 = sand.u32 %s321, 1
        %s516 = smul.addr %s515, 16
        %s517 = scalar_lea.vmem [#allocation10], %s516
        %s518 = smul.u32 2, %s30
        %p519 = scmp.lt.s32.totalorder %s518, 3
        %s520 = scalar_select %p519, %s518, 3
        %s521 = smul.addr %s520, 8
        %s522 = scalar_lea.vmem %s0, %s521
        %s523 = smul.u32 2, %s30
        %s524 = smul.u32 2, %s30
        %p525 = scmp.lt.s32.totalorder %s524, 3
        %s526 = scalar_select %p525, %s524, 3
        %s527 = smul.addr %s526, 8
        %s528 = scalar_lea.vmem %s1, %s527
        %s529 = smul.u32 2, %s30
        %s530 = smul.u32 2, %s30
        %v531 = vld [vmem:[%s522] sm:$0xff]
        %v532 = vld [vmem:[%s522 + $0x8] sm:$0xff]
        %v533 = vlaneseq
        %v534 = vand.u32 %v533, 127
        %535 = vset.pattern.permute.xlu0 0
        %536 = vperm.xlu0 %535, %v531
        %v537 = vpop.permute.xlu0 %536
        %538 = vset.pattern.permute.xlu0 0
        %539 = vperm.xlu0 %538, %v532
        %v540 = vpop.permute.xlu0 %539
        %vm541 = vcmp.eq.s32.totalorder %v534, %v537
        %vm542 = vcmp.eq.s32.totalorder %v534, %v540
        %v543 = vsel %vm541, 1, 0
        %v544 = vsel %vm542, 1, 0
        %v545 = vcvt.s32.f32 %v543
        %v546 = vcvt.s32.f32 %v544
        %v547 = vld [vmem:[#allocation2] sm:$0xff]
        %v548 = vld [vmem:[#allocation2 + $0x8] sm:$0xff]
        %v549 = vld [vmem:[#allocation2 + $0x10] sm:$0xff]
        %v550 = vld [vmem:[#allocation2 + $0x18] sm:$0xff]
        %v551 = vld [vmem:[#allocation2 + $0x20] sm:$0xff]
        %v552 = vld [vmem:[#allocation2 + $0x28] sm:$0xff]
        %v553 = vld [vmem:[#allocation2 + $0x30] sm:$0xff]
        %v554 = vld [vmem:[#allocation2 + $0x38] sm:$0xff]
        %v555 = vld [vmem:[#allocation2 + $0x40] sm:$0xff]
        %v556 = vld [vmem:[#allocation2 + $0x48] sm:$0xff]
        %v557 = vld [vmem:[#allocation2 + $0x50] sm:$0xff]
        %v558 = vld [vmem:[#allocation2 + $0x58] sm:$0xff]
        %v559 = vld [vmem:[#allocation2 + $0x60] sm:$0xff]
        %v560 = vld [vmem:[#allocation2 + $0x68] sm:$0xff]
        %v561 = vld [vmem:[#allocation2 + $0x70] sm:$0xff]
        %v562 = vld [vmem:[#allocation2 + $0x78] sm:$0xff]
        %563 = vmatpush.msra.mxu0 %v562
        %564 = vmatpush.msra.mxu0 %v561
        %565 = vmatpush.msra.mxu0 %v560
        %566 = vmatpush.msra.mxu0 %v559
        %567 = vmatpush.msra.mxu0 %v558
        %568 = vmatpush.msra.mxu0 %v557
        %569 = vmatpush.msra.mxu0 %v556
        %570 = vmatpush.msra.mxu0 %v555
        %571 = vmatpush.msra.mxu0 %v554
        %572 = vmatpush.msra.mxu0 %v553
        %573 = vmatpush.msra.mxu0 %v552
        %574 = vmatpush.msra.mxu0 %v551
        %575 = vmatpush.msra.mxu0 %v550
        %576 = vmatpush.msra.mxu0 %v549
        %577 = vmatpush.msra.mxu0 %v548
        %578 = vmatpush.msra.mxu0 %v547
        %579 = vmatmul.f32.gmra.mxu0 %v545
        %v580 = vpop.f32.mrf.mxu0
        %v581 = vadd.f32 0.0, %v580
        %582 = vmatmul.f32.gmra.mxu0 %v546
        %v583 = vpop.f32.mrf.mxu0
        %v584 = vadd.f32 0.0, %v583
        %585 = vdwg.mxu0
        %v586 = vld [vmem:[%s528] sm:$0xff]
        %v587 = vld [vmem:[%s528 + $0x8] sm:$0xff]
        %v588 = vld [vmem:[%s3] sm:$0xff]
        %v589 = vld [vmem:[%s3 + $0x8] sm:$0xff]
        %v590 = vld [vmem:[%s4] sm:$0x1]
        %v592 = vperm.slane %v590, 0
        %vm594 = vcmask 130048
        %v596 = vsel %vm594, %v586, 0
        %v599 = vsel %vm594, %v587, 0
        %601 = vmatpush.msra.mxu0 0.0
        %602 = vmatpush.msra.mxu0 0.0
        %603 = vmatpush.msra.mxu0 0.0
        %604 = vmatpush.msra.mxu0 0.0
        %605 = vmatpush.msra.mxu0 0.0
        %606 = vmatpush.msra.mxu0 0.0
        %607 = vmatpush.msra.mxu0 0.0
        %608 = vmatpush.msra.mxu0 0.0
        %609 = vmatpush.msra.mxu0 0.0
        %610 = vmatpush.msra.mxu0 0.0
        %611 = vmatpush.msra.mxu0 0.0
        %612 = vmatpush.msra.mxu0 0.0
        %613 = vmatpush.msra.mxu0 0.0
        %614 = vmatpush.msra.mxu0 0.0
        %615 = vmatpush.msra.mxu0 %v589
        %616 = vmatpush.msra.mxu0 %v588
        %617 = vmatmul.f32.gmra.mxu0 %v596
        %v618 = vpop.f32.mrf.mxu0
        %v619 = vadd.f32 %v592, %v618
        %620 = vmatmul.f32.gmra.mxu0 %v599
        %v621 = vpop.f32.mrf.mxu0
        %v622 = vadd.f32 %v592, %v621
        %623 = vdwg.mxu0
        %v624 = vld [vmem:[#allocation5] sm:$0xff]
        %v625 = vld [vmem:[#allocation5 + $0x8] sm:$0xff]
        %v626 = vld [vmem:[#allocation5 + $0x10] sm:$0xff]
        %v627 = vld [vmem:[#allocation5 + $0x18] sm:$0xff]
        %v628 = vld [vmem:[#allocation5 + $0x20] sm:$0xff]
        %v629 = vld [vmem:[#allocation5 + $0x28] sm:$0xff]
        %v630 = vld [vmem:[#allocation5 + $0x30] sm:$0xff]
        %v631 = vld [vmem:[#allocation5 + $0x38] sm:$0xff]
        %v632 = vld [vmem:[#allocation5 + $0x40] sm:$0xff]
        %v633 = vld [vmem:[#allocation5 + $0x48] sm:$0xff]
        %v634 = vld [vmem:[#allocation5 + $0x50] sm:$0xff]
        %v635 = vld [vmem:[#allocation5 + $0x58] sm:$0xff]
        %v636 = vld [vmem:[#allocation5 + $0x60] sm:$0xff]
        %v637 = vld [vmem:[#allocation5 + $0x68] sm:$0xff]
        %v638 = vld [vmem:[#allocation5 + $0x70] sm:$0xff]
        %v639 = vld [vmem:[#allocation5 + $0x78] sm:$0xff]
        %v640 = vld [vmem:[#allocation5 + $0x80] sm:$0xff]
        %v641 = vld [vmem:[#allocation5 + $0x88] sm:$0xff]
        %v642 = vld [vmem:[#allocation5 + $0x90] sm:$0xff]
        %v643 = vld [vmem:[#allocation5 + $0x98] sm:$0xff]
        %v644 = vld [vmem:[#allocation5 + $0xa0] sm:$0xff]
        %v645 = vld [vmem:[#allocation5 + $0xa8] sm:$0xff]
        %v646 = vld [vmem:[#allocation5 + $0xb0] sm:$0xff]
        %v647 = vld [vmem:[#allocation5 + $0xb8] sm:$0xff]
        %v648 = vld [vmem:[#allocation5 + $0xc0] sm:$0xff]
        %v649 = vld [vmem:[#allocation5 + $0xc8] sm:$0xff]
        %v650 = vld [vmem:[#allocation5 + $0xd0] sm:$0xff]
        %v651 = vld [vmem:[#allocation5 + $0xd8] sm:$0xff]
        %v652 = vld [vmem:[#allocation5 + $0xe0] sm:$0xff]
        %v653 = vld [vmem:[#allocation5 + $0xe8] sm:$0xff]
        %v654 = vld [vmem:[#allocation5 + $0xf0] sm:$0xff]
        %v655 = vld [vmem:[#allocation5 + $0xf8] sm:$0xff]
        %v656 = vld [vmem:[%s6] sm:$0x1]
        %v658 = vperm.slane %v656, 0
        %660 = vmatpush.msra.mxu0 %v639
        %661 = vmatpush.msra.mxu0 %v638
        %662 = vmatpush.msra.mxu0 %v637
        %663 = vmatpush.msra.mxu0 %v636
        %664 = vmatpush.msra.mxu0 %v635
        %665 = vmatpush.msra.mxu0 %v634
        %666 = vmatpush.msra.mxu0 %v633
        %667 = vmatpush.msra.mxu0 %v632
        %668 = vmatpush.msra.mxu0 %v631
        %669 = vmatpush.msra.mxu0 %v630
        %670 = vmatpush.msra.mxu0 %v629
        %671 = vmatpush.msra.mxu0 %v628
        %672 = vmatpush.msra.mxu0 %v627
        %673 = vmatpush.msra.mxu0 %v626
        %674 = vmatpush.msra.mxu0 %v625
        %675 = vmatpush.msra.mxu0 %v624
        %676 = vmatmul.f32.gmra.mxu0 %v581
        %v677 = vpop.f32.mrf.mxu0
        %v678 = vadd.f32 %v658, %v677
        %679 = vmatmul.f32.gmra.mxu0 %v584
        %v680 = vpop.f32.mrf.mxu0
        %v681 = vadd.f32 %v658, %v680
        %682 = vdwg.mxu0
        %683 = vmatpush.msra.mxu0 %v655
        %684 = vmatpush.msra.mxu0 %v654
        %685 = vmatpush.msra.mxu0 %v653
        %686 = vmatpush.msra.mxu0 %v652
        %687 = vmatpush.msra.mxu0 %v651
        %688 = vmatpush.msra.mxu0 %v650
        %689 = vmatpush.msra.mxu0 %v649
        %690 = vmatpush.msra.mxu0 %v648
        %691 = vmatpush.msra.mxu0 %v647
        %692 = vmatpush.msra.mxu0 %v646
        %693 = vmatpush.msra.mxu0 %v645
        %694 = vmatpush.msra.mxu0 %v644
        %695 = vmatpush.msra.mxu0 %v643
        %696 = vmatpush.msra.mxu0 %v642
        %697 = vmatpush.msra.mxu0 %v641
        %698 = vmatpush.msra.mxu0 %v640
        %699 = vmatmul.f32.gmra.mxu0 %v619
        %v700 = vpop.f32.mrf.mxu0
        %v701 = vadd.f32 %v678, %v700
        %702 = vmatmul.f32.gmra.mxu0 %v622
        %v703 = vpop.f32.mrf.mxu0
        %v704 = vadd.f32 %v681, %v703
        %705 = vdwg.mxu0
        %v706 = vxor.u32 %v701, 2147483648
        %v707 = vxor.u32 %v704, 2147483648
        %v708 = vmul.f32 %v706, 1.442695
        %v709 = vpow.pop %v708
        %v710 = vmul.f32 %v707, 1.442695
        %v711 = vpow.pop %v710
        %v712 = vadd.f32 %v709, 1.0
        %v713 = vadd.f32 %v711, 1.0
        %v714 = vrcp.pop %v712
        %v715 = vmul.f32 %v712, %v714
        %v716 = vsub.f32 1.0, %v715
        %v717 = vmul.f32 %v714, %v716
        %v718 = vadd.f32 %v714, %v717
        %vm719 = vweird.f32 %v712
        %vm720 = vweird.f32 %v714
        %vm721 = vmor %vm719, %vm720
        %v722 = vsel %vm721, %v714, %v718
        %v723 = vand.u32 2147483647, %v712
        %vm724 = vcmp.eq.f32.partialorder %v723, 8.507059e+37
        %v725 = vand.u32 %v712, 2147483648
        %v726 = vor.u32 1.1754944e-38, %v725
        %v727 = vsel %vm724, %v726, %v722
        %v728 = vmul.f32 1.0, %v727
        %v729 = vrcp.pop %v713
        %v730 = vmul.f32 %v713, %v729
        %v731 = vsub.f32 1.0, %v730
        %v732 = vmul.f32 %v729, %v731
        %v733 = vadd.f32 %v729, %v732
        %vm734 = vweird.f32 %v713
        %vm735 = vweird.f32 %v729
        %vm736 = vmor %vm734, %vm735
        %v737 = vsel %vm736, %v729, %v733
        %v738 = vand.u32 2147483647, %v713
        %vm739 = vcmp.eq.f32.partialorder %v738, 8.507059e+37
        %v740 = vand.u32 %v713, 2147483648
        %v741 = vor.u32 1.1754944e-38, %v740
        %v742 = vsel %vm739, %v741, %v737
        %v743 = vmul.f32 1.0, %v742
        %v744 = vsub.f32 %v581, %v619
        %v745 = vsub.f32 %v584, %v622
        %v746 = vmul.f32 %v728, %v744
        %v747 = vmul.f32 %v743, %v745
        %v748 = vadd.f32 %v619, %v746
        %v749 = vadd.f32 %v622, %v747
        %v750 = vld [vmem:[#allocation7] sm:$0xff]
        %v751 = vld [vmem:[#allocation7 + $0x8] sm:$0xff]
        %v752 = vld [vmem:[#allocation7 + $0x10] sm:$0xff]
        %v753 = vld [vmem:[#allocation7 + $0x18] sm:$0xff]
        %v754 = vld [vmem:[#allocation7 + $0x20] sm:$0xff]
        %v755 = vld [vmem:[#allocation7 + $0x28] sm:$0xff]
        %v756 = vld [vmem:[#allocation7 + $0x30] sm:$0xff]
        %v757 = vld [vmem:[#allocation7 + $0x38] sm:$0xff]
        %v758 = vld [vmem:[#allocation7 + $0x40] sm:$0xff]
        %v759 = vld [vmem:[#allocation7 + $0x48] sm:$0xff]
        %v760 = vld [vmem:[#allocation7 + $0x50] sm:$0xff]
        %v761 = vld [vmem:[#allocation7 + $0x58] sm:$0xff]
        %v762 = vld [vmem:[#allocation7 + $0x60] sm:$0xff]
        %v763 = vld [vmem:[#allocation7 + $0x68] sm:$0xff]
        %v764 = vld [vmem:[#allocation7 + $0x70] sm:$0xff]
        %v765 = vld [vmem:[#allocation7 + $0x78] sm:$0xff]
        %v766 = vld [vmem:[%s8] sm:$0x1]
        %v768 = vperm.slane %v766, 0
        %770 = vmatpush.msra.mxu0 %v765
        %771 = vmatpush.msra.mxu0 %v764
        %772 = vmatpush.msra.mxu0 %v763
        %773 = vmatpush.msra.mxu0 %v762
        %774 = vmatpush.msra.mxu0 %v761
        %775 = vmatpush.msra.mxu0 %v760
        %776 = vmatpush.msra.mxu0 %v759
        %777 = vmatpush.msra.mxu0 %v758
        %778 = vmatpush.msra.mxu0 %v757
        %779 = vmatpush.msra.mxu0 %v756
        %780 = vmatpush.msra.mxu0 %v755
        %781 = vmatpush.msra.mxu0 %v754
        %782 = vmatpush.msra.mxu0 %v753
        %783 = vmatpush.msra.mxu0 %v752
        %784 = vmatpush.msra.mxu0 %v751
        %785 = vmatpush.msra.mxu0 %v750
        %786 = vmatmul.f32.gmra.mxu0 %v748
        %v787 = vpop.f32.mrf.mxu0
        %v788 = vadd.f32 %v768, %v787
        %789 = vmatmul.f32.gmra.mxu0 %v749
        %v790 = vpop.f32.mrf.mxu0
        %v791 = vadd.f32 %v768, %v790
        %792 = vdwg.mxu0
        %v793 = vxor.u32 %v788, 2147483648
        %v794 = vxor.u32 %v791, 2147483648
        %v795 = vmul.f32 %v793, 1.442695
        %v796 = vpow.pop %v795
        %v797 = vmul.f32 %v794, 1.442695
        %v798 = vpow.pop %v797
        %v799 = vadd.f32 %v796, 1.0
        %v800 = vadd.f32 %v798, 1.0
        %v801 = vrcp.pop %v799
        %v802 = vmul.f32 %v799, %v801
        %v803 = vsub.f32 1.0, %v802
        %v804 = vmul.f32 %v801, %v803
        %v805 = vadd.f32 %v801, %v804
        %vm806 = vweird.f32 %v799
        %vm807 = vweird.f32 %v801
        %vm808 = vmor %vm806, %vm807
        %v809 = vsel %vm808, %v801, %v805
        %v810 = vand.u32 2147483647, %v799
        %vm811 = vcmp.eq.f32.partialorder %v810, 8.507059e+37
        %v812 = vand.u32 %v799, 2147483648
        %v813 = vor.u32 1.1754944e-38, %v812
        %v814 = vsel %vm811, %v813, %v809
        %v815 = vmul.f32 1.0, %v814
        %v816 = vrcp.pop %v800
        %v817 = vmul.f32 %v800, %v816
        %v818 = vsub.f32 1.0, %v817
        %v819 = vmul.f32 %v816, %v818
        %v820 = vadd.f32 %v816, %v819
        %vm821 = vweird.f32 %v800
        %vm822 = vweird.f32 %v816
        %vm823 = vmor %vm821, %vm822
        %v824 = vsel %vm823, %v816, %v820
        %v825 = vand.u32 2147483647, %v800
        %vm826 = vcmp.eq.f32.partialorder %v825, 8.507059e+37
        %v827 = vand.u32 %v800, 2147483648
        %v828 = vor.u32 1.1754944e-38, %v827
        %v829 = vsel %vm826, %v828, %v824
        %v830 = vmul.f32 1.0, %v829
        %v831 = vmul.f32 %v788, %v815
        %v832 = vmul.f32 %v791, %v830
        %833 = vadd.xlane.f32.xlu0 %v831
        %v834 = vpop.xlane.xlu0 %833
        %835 = vadd.xlane.f32.xlu0 %v832
        %v836 = vpop.xlane.xlu0 %835
        %v837 = vmul.f32 %v834, 0.03125
        %v838 = vmul.f32 %v836, 0.03125
        %v839 = vsub.f32 %v831, %v837
        %v840 = vsub.f32 %v832, %v838
        %vm841 = vcmp.lt.s32.totalorder %v534, 32
        %v842 = vsel %vm841, %v839, 0.0
        %v843 = vsel %vm841, %v840, 0.0
        %v844 = vmul.f32 %v842, %v842
        %v845 = vmul.f32 %v843, %v843
        %846 = vadd.xlane.f32.xlu0 %v844
        %v847 = vpop.xlane.xlu0 %846
        %848 = vadd.xlane.f32.xlu0 %v845
        %v849 = vpop.xlane.xlu0 %848
        %v850 = vmul.f32 %v847, 0.03125
        %v851 = vmul.f32 %v849, 0.03125
        %v852 = vadd.f32 %v850, 1e-05
        %v853 = vadd.f32 %v851, 1e-05
        %v854 = vrsqrt.pop %v852
        %v855 = vmul.f32 %v854, %v852
        %v856 = vmul.f32 %v855, %v854
        %v857 = vmul.f32 0.5, %v856
        %v858 = vsub.f32 1.5, %v857
        %v859 = vmul.f32 %v854, %v858
        %vm860 = vweird.f32 %v852
        %vm861 = vweird.f32 %v854
        %vm862 = vmor %vm860, %vm861
        %v863 = vsel %vm862, %v854, %v859
        %v864 = vrsqrt.pop %v853
        %v865 = vmul.f32 %v864, %v853
        %v866 = vmul.f32 %v865, %v864
        %v867 = vmul.f32 0.5, %v866
        %v868 = vsub.f32 1.5, %v867
        %v869 = vmul.f32 %v864, %v868
        %vm870 = vweird.f32 %v853
        %vm871 = vweird.f32 %v864
        %vm872 = vmor %vm870, %vm871
        %v873 = vsel %vm872, %v864, %v869
        %v874 = vmul.f32 %v842, %v863
        %v875 = vmul.f32 %v843, %v873
        %v876 = vld [vmem:[%s9] sm:$0x1]
        %v878 = vperm.slane %v876, 0
        %v880 = vmul.f32 %v874, %v878
        %v881 = vmul.f32 %v875, %v878
        %v882 = vld [vmem:[%s10] sm:$0x1]
        %v884 = vperm.slane %v882, 0
        %v886 = vadd.f32 %v880, %v884
        %v887 = vadd.f32 %v881, %v884
        %v888 = vld [vmem:[#allocation8] sm:$0xff]
        %v889 = vld [vmem:[#allocation8 + $0x8] sm:$0xff]
        %v890 = vld [vmem:[#allocation8 + $0x10] sm:$0xff]
        %v891 = vld [vmem:[#allocation8 + $0x18] sm:$0xff]
        %v892 = vld [vmem:[#allocation8 + $0x20] sm:$0xff]
        %v893 = vld [vmem:[#allocation8 + $0x28] sm:$0xff]
        %v894 = vld [vmem:[#allocation8 + $0x30] sm:$0xff]
        %v895 = vld [vmem:[#allocation8 + $0x38] sm:$0xff]
        %v896 = vld [vmem:[#allocation8 + $0x40] sm:$0xff]
        %v897 = vld [vmem:[#allocation8 + $0x48] sm:$0xff]
        %v898 = vld [vmem:[#allocation8 + $0x50] sm:$0xff]
        %v899 = vld [vmem:[#allocation8 + $0x58] sm:$0xff]
        %v900 = vld [vmem:[#allocation8 + $0x60] sm:$0xff]
        %v901 = vld [vmem:[#allocation8 + $0x68] sm:$0xff]
        %v902 = vld [vmem:[#allocation8 + $0x70] sm:$0xff]
        %v903 = vld [vmem:[#allocation8 + $0x78] sm:$0xff]
        %v904 = vld [vmem:[%s12] sm:$0x1]
        %v906 = vperm.slane %v904, 0
        %908 = vmatpush.msra.mxu0 %v903
        %909 = vmatpush.msra.mxu0 %v902
        %910 = vmatpush.msra.mxu0 %v901
        %911 = vmatpush.msra.mxu0 %v900
        %912 = vmatpush.msra.mxu0 %v899
        %913 = vmatpush.msra.mxu0 %v898
        %914 = vmatpush.msra.mxu0 %v897
        %915 = vmatpush.msra.mxu0 %v896
        %916 = vmatpush.msra.mxu0 %v895
        %917 = vmatpush.msra.mxu0 %v894
        %918 = vmatpush.msra.mxu0 %v893
        %919 = vmatpush.msra.mxu0 %v892
        %920 = vmatpush.msra.mxu0 %v891
        %921 = vmatpush.msra.mxu0 %v890
        %922 = vmatpush.msra.mxu0 %v889
        %923 = vmatpush.msra.mxu0 %v888
        %924 = vmatmul.f32.gmra.mxu0 %v886
        %v925 = vpop.f32.mrf.mxu0
        %v926 = vadd.f32 %v906, %v925
        %927 = vmatmul.f32.gmra.mxu0 %v887
        %v928 = vpop.f32.mrf.mxu0
        %v929 = vadd.f32 %v906, %v928
        %930 = vdwg.mxu0
        %931 = vst [vmem:[%s517] sm:$0xff] %v926
        %932 = vst [vmem:[%s517 + $0x8] sm:$0xff] %v929
        %s933 = sand.u32 %s321, 1
        %s934 = scalar_lea.sflag [#allocation4], %s933
        %s935 = sand.u32 %s321, 1
        %s936 = smul.addr %s935, 16
        %s937 = scalar_lea.vmem [#allocation10], %s936
        // Predicated region
        $region89: #{tpu_custom_call.1} parent=71 // pred_check
          %p938 = pneg %p331
        $region90: #{tpu_custom_call.1} parent=71 // pred_check_branch
          %940 = sbr.rel (%p938) target = $region92
        $region91: #{tpu_custom_call.1} parent=71 // pred_region
          %s941 = smul.u32 2, %s30
          %943 = vsyncadd %s934, 0
          %s944 = smul.addr %s941, 8
          %s945 = scalar_lea.hbm %s13, %s944
          %s946 = sshll.u32 %s937, 4
          %s947 = int_to_ptr.vmem [resolvable:$true] %s946
          %s948 = sshll.u32 %s945, 4
          %s949 = int_to_ptr.hbm [resolvable:$true] %s948
          %954 = dma.vmem_to_hbm [thread:$0]  %s947, 256, %s949, %s934, 128, 128, 8
        $region92: #{tpu_custom_call.1} parent=71 // pred_fallthru
          _
      $region72: #{tpu_custom_call.1} parent=5 // pred_fallthru
        _
      %p955 = scmp.le.s32.totalorder 2, %s25
      // Predicated region
      $region93: #{tpu_custom_call.1} parent=5 // pred_check
        %p956 = pneg %p955
      $region94: #{tpu_custom_call.1} parent=5 // pred_check_branch
        %958 = sbr.rel (%p956) target = $region96
      $region95: #{tpu_custom_call.1} parent=5 // pred_region
        %s959 = ssub.s32 %s25, 2
        // Predicated region
        $region97: #{tpu_custom_call.1} parent=95 // pred_check
          %p960 = pneg %p337
        $region98: #{tpu_custom_call.1} parent=95 // pred_check_branch
          %962 = sbr.rel (%p960) target = $region100
        $region99: #{tpu_custom_call.1} parent=95 // pred_region
          %s963 = sand.u32 %s322, 1
          %s964 = scalar_lea.sflag [#allocation4], %s963
          %s965 = sand.u32 %s322, 1
          %s966 = smul.addr %s965, 16
          %s967 = scalar_lea.vmem [#allocation10], %s966
          %969 = dma.done %s964, 256
        $region100: #{tpu_custom_call.1} parent=95 // pred_fallthru
          _
      $region96: #{tpu_custom_call.1} parent=5 // pred_fallthru
        _
    $region6: #{tpu_custom_call.1} parent=1 // loop_footer
      %s29 = sadd.s32 1, %s25
    $region7: #{tpu_custom_call.1} parent=1 // loop_footer_branch
      %24 = sbr.rel target = $region3
    $region8: #{tpu_custom_call.1} parent=1 // loop_exit
      _
    %970 = vsyncpa [#allocation3], 1
    %s971 = scalar_lea.sflag [#allocation3], 1
    %972 = vsyncpa %s971, 1
    %973 = vsyncpa [#allocation6], 1
    %974 = vsyncpa [#allocation9], 1
    %975 = vsyncpa [#allocation4], 1
    %s976 = scalar_lea.sflag [#allocation4], 1
    %977 = vsyncpa %s976, 1

</llo_original>
